<compile_context>
chip_gen: v7x
topology: tpu7x:2x2x1
jax: 0.10.0
libtpu: 0.0.40
codegen_flags: <defaults>
</compile_context>

<pallas_src>
import functools

import jax
import jax.numpy as jnp
from jax.experimental import pallas as pl
from jax.experimental.pallas import tpu as pltpu


# ---------------------------------------------------------------------------
# Activation table (applied on the f32 accumulator inside the kernel)
# ---------------------------------------------------------------------------
_ACTIVATIONS = {
    "none": lambda v: v,
    "relu": lambda v: jnp.maximum(v, 0.0),
    "tanh": jnp.tanh,
    "sigmoid": jax.nn.sigmoid,
    "hardtanh": lambda v: jnp.clip(v, -1.0, 1.0),
    "elu": lambda v: jnp.where(v > 0, v, jnp.expm1(v)),
    # celu(alpha=1) == elu(alpha=1); PyTorch's default alpha is 1.0.
    "celu": lambda v: jnp.where(v > 0, v, jnp.expm1(v)),
    "selu": lambda v: 1.0507009873554805
    * jnp.where(v > 0, v, 1.6732632423543772 * jnp.expm1(v)),
}


def _round_up(v, m):
    return (v + m - 1) // m * m


# ---------------------------------------------------------------------------
# Kernel: per-image conv as a sum of KH*KW shifted matmuls (no im2col in HBM)
# ---------------------------------------------------------------------------
def _make_convcell_kernel(activation, tap_offsets):
    act = _ACTIVATIONS[activation]

    def kernel(w_ref, b_ref, x_ref, o_ref):
        # w_ref: (KH*KW, Cout, Cin)  resident across the grid (input dtype)
        # b_ref: (Cout, 1)           resident across the grid (f32)
        # x_ref: (1, Cin, Lin)       zero-padded, spatially-flattened image
        # o_ref: (1, Cout, Lout)     dense conv output on the padded-column grid
        cout, lout = o_ref.shape[1], o_ref.shape[2]
        x = x_ref[0]                                   # (Cin, Lin), VMEM resident
        acc = jnp.zeros((cout, lout), jnp.float32)
        for t, off in enumerate(tap_offsets):          # static unroll over KH*KW taps
            acc += jnp.dot(
                w_ref[t],                              # (Cout, Cin)
                x[:, off:off + lout],                  # shifted view (Cin, Lout)
                preferred_element_type=jnp.float32,
            )
        acc += b_ref[...]                              # (Cout, 1) broadcasts over lanes
        o_ref[0] = act(acc).astype(o_ref.dtype)

    return kernel


# ---------------------------------------------------------------------------
# Wrapper: ConvCell forward = Conv2d -> Activation -> Normalization('none')
# ---------------------------------------------------------------------------
@functools.partial(
    jax.jit, static_argnames=("stride", "padding", "activation", "normalization")
)
def conv_cell_forward(
    x, weight, bias=None, *, stride=1, padding=1, activation="relu",
    normalization="none",
):
    """x: (N, Cin, H, W) NCHW, weight: (Cout, Cin, KH, KW) OIHW, bias: (Cout,) or None."""
    if normalization != "none":
        # TODO(synk): 'bn'/'in'/'ln' in the original use 1-D norm layers that reject
        # 4-D conv outputs; only 'none' is functional for ConvCell on images.
        raise NotImplementedError("only normalization='none' is supported")

    n, cin, h, w = x.shape
    cout, cin_w, kh, kw = weight.shape
    assert cin == cin_w

    hp, wp = h + 2 * padding, w + 2 * padding
    hout = (hp - kh) // stride + 1
    wout = (wp - kw) // stride + 1
    hdense = hp - kh + 1                    # stride-1 output rows on the padded grid

    # Dense output keeps all Wp columns per row (cols >= wp-kw+1 are discarded later),
    # which makes every kernel tap a pure lane shift of the flattened padded image.
    l_valid = hdense * wp
    l_out = _round_up(l_valid, 128)         # lane-dense output block (unmasked stores)
    tap_offsets = tuple(i * wp + j for i in range(kh) for j in range(kw))
    lin = _round_up(tap_offsets[-1] + l_out, 128)

    # --- layout plumbing only: zero-pad and flatten spatial dims -----------------
    xp = jnp.pad(x, ((0, 0), (0, 0), (padding, padding), (padding, padding)))
    x_flat = xp.reshape(n, cin, hp * wp)
    x_flat = jnp.pad(x_flat, ((0, 0), (0, 0), (0, lin - hp * wp)))

    # Operands stay in the input dtype (bf16 stays bf16); accumulation is f32.
    w_taps = (
        jnp.transpose(weight, (2, 3, 0, 1)).reshape(kh * kw, cout, cin).astype(x.dtype)
    )
    b_col = (
        bias.reshape(cout, 1).astype(jnp.float32)
        if bias is not None
        else jnp.zeros((cout, 1), jnp.float32)
    )

    # --- VMEM-budget-derived limit ------------------------------------------------
    dsz = x.dtype.itemsize
    est_bytes = (
        2 * (cin * lin + cout * l_out) * dsz      # double-buffered in/out blocks
        + 2 * (kh * kw * cout * cin) * dsz        # weight taps (default 2 buffers)
        + cout * l_out * 4                        # f32 accumulator
        + (1 << 20)                               # slack
    )
    vmem_limit = int(min(100 * 1024 * 1024, max(32 * 1024 * 1024, 2 * est_bytes)))

    out_flat = pl.pallas_call(
        _make_convcell_kernel(activation, tap_offsets),
        out_shape=jax.ShapeDtypeStruct((n, cout, l_out), x.dtype),
        grid=(n,),
        in_specs=[
            pl.BlockSpec((kh * kw, cout, cin), lambda b: (0, 0, 0)),  # weights (resident)
            pl.BlockSpec((cout, 1), lambda b: (0, 0)),                # bias    (resident)
            pl.BlockSpec((1, cin, lin), lambda b: (b, 0, 0)),         # one image / step
        ],
        out_specs=pl.BlockSpec((1, cout, l_out), lambda b: (b, 0, 0)),
        compiler_params=pltpu.CompilerParams(
            dimension_semantics=("parallel",),   # batch splits across v7x's 2 TCs
            vmem_limit_bytes=vmem_limit,
        ),
    )(w_taps, b_col, x_flat)

    # Discard padded-grid garbage columns/lanes; subsample for stride > 1.
    out_dense = out_flat[:, :, : hdense * wp].reshape(n, cout, hdense, wp)
    return out_dense[:, :, ::stride, ::stride][:, :, :hout, :wout]


# ---------------------------------------------------------------------------
# Demo / correctness check
# ---------------------------------------------------------------------------
if __name__ == "__main__":
    key = jax.random.PRNGKey(0)
    k_x, k_w, k_b = jax.random.split(key, 3)

    # ConvCell config: input_size=4, output_size=8, kernel_size=3, stride=1,
    # padding=1, bias=True, normalization='none', activation='relu'
    N, CIN, H, W = 2, 4, 16, 16
    COUT, K = 8, 3

    x = jax.random.normal(k_x, (N, CIN, H, W), dtype=jnp.float32)
    weight = jax.random.normal(k_w, (COUT, CIN, K, K), dtype=jnp.float32) * 0.1
    bias = jax.random.normal(k_b, (COUT,), dtype=jnp.float32) * 0.1

    y = conv_cell_forward(x, weight, bias, stride=1, padding=1, activation="relu")
    y = jax.block_until_ready(y)

    # Pure-JAX reference: conv2d -> relu -> (norm 'none' == identity)
    y_ref = jax.lax.conv_general_dilated(
        x, weight, window_strides=(1, 1), padding=((1, 1), (1, 1)),
        dimension_numbers=("NCHW", "OIHW", "NCHW"),
    ) + bias.reshape(1, -1, 1, 1)
    y_ref = jnp.maximum(y_ref, 0.0)

    assert y.shape == (N, COUT, H, W) and y.dtype == x.dtype
    assert jnp.allclose(y, y_ref, atol=1e-5, rtol=1e-5), "mismatch vs conv+relu reference"

    print("KERNEL_OK")
</pallas_src>

<mosaic_0001>
module attributes {stable_mosaic.version = 11 : i64} {
  func.func @kernel(%arg0: i32, %arg1: memref<9x8x4xf32, #tpu.memory_space<vmem>>, %arg2: memref<8x1xf32, #tpu.memory_space<vmem>>, %arg3: memref<1x4x512xf32, #tpu.memory_space<vmem>>, %arg4: memref<1x8x384xf32, #tpu.memory_space<vmem>>) attributes {dimension_semantics = [#tpu.dimension_semantics<parallel>], iteration_bounds = array<i64: 2>, scalar_prefetch = 0 : i64, scratch_operands = 0 : i64, tpu.core_type = #tpu.core_type<tc>, window_params = [{pipeline_mode = #tpu.pipeline_mode<synchronous>, transform_indices = @transform_0, window_bounds = array<i64: 9, 8, 4>}, {pipeline_mode = #tpu.pipeline_mode<synchronous>, transform_indices = @transform_1, window_bounds = array<i64: 8, 1>}, {transform_indices = @transform_2, window_bounds = array<i64: 1, 4, 512>}, {transform_indices = @transform_3, window_bounds = array<i64: 1, 8, 384>}]} {
    %c0 = arith.constant 0 : index
    %c0_0 = arith.constant 0 : index
    %c0_1 = arith.constant 0 : index
    %0 = vector.load %arg3[%c0, %c0_0, %c0_1] : memref<1x4x512xf32, #tpu.memory_space<vmem>>, vector<1x4x512xf32>
    %1 = vector.shape_cast %0 : vector<1x4x512xf32> to vector<4x512xf32>
    %cst = arith.constant 0.000000e+00 : f32
    %2 = vector.broadcast %cst : f32 to vector<8x384xf32>
    %c0_2 = arith.constant 0 : index
    %c0_3 = arith.constant 0 : index
    %c0_4 = arith.constant 0 : index
    %3 = vector.load %arg1[%c0_2, %c0_3, %c0_4] : memref<9x8x4xf32, #tpu.memory_space<vmem>>, vector<1x8x4xf32>
    %4 = vector.shape_cast %3 : vector<1x8x4xf32> to vector<8x4xf32>
    %5 = vector.extract_strided_slice %1 {offsets = [0, 0], sizes = [4, 384], strides = [1, 1]} : vector<4x512xf32> to vector<4x384xf32>
    %cst_5 = arith.constant dense<0.000000e+00> : vector<8x384xf32>
    %6 = tpu.matmul %4, %5, %cst_5 {dimension_numbers = #tpu.dot_dimension_numbers<[1], [0], [0], [1], [0, 0, 1, 1], [], []>} : vector<8x4xf32>, vector<4x384xf32>, vector<8x384xf32> -> vector<8x384xf32>
    %7 = arith.addf %2, %6 : vector<8x384xf32>
    %c1 = arith.constant 1 : index
    %c0_6 = arith.constant 0 : index
    %c0_7 = arith.constant 0 : index
    %8 = vector.load %arg1[%c1, %c0_6, %c0_7] : memref<9x8x4xf32, #tpu.memory_space<vmem>>, vector<1x8x4xf32>
    %9 = vector.shape_cast %8 : vector<1x8x4xf32> to vector<8x4xf32>
    %10 = vector.extract_strided_slice %1 {offsets = [0, 1], sizes = [4, 384], strides = [1, 1]} : vector<4x512xf32> to vector<4x384xf32>
    %cst_8 = arith.constant dense<0.000000e+00> : vector<8x384xf32>
    %11 = tpu.matmul %9, %10, %cst_8 {dimension_numbers = #tpu.dot_dimension_numbers<[1], [0], [0], [1], [0, 0, 1, 1], [], []>} : vector<8x4xf32>, vector<4x384xf32>, vector<8x384xf32> -> vector<8x384xf32>
    %12 = arith.addf %7, %11 : vector<8x384xf32>
    %c2 = arith.constant 2 : index
    %c0_9 = arith.constant 0 : index
    %c0_10 = arith.constant 0 : index
    %13 = vector.load %arg1[%c2, %c0_9, %c0_10] : memref<9x8x4xf32, #tpu.memory_space<vmem>>, vector<1x8x4xf32>
    %14 = vector.shape_cast %13 : vector<1x8x4xf32> to vector<8x4xf32>
    %15 = vector.extract_strided_slice %1 {offsets = [0, 2], sizes = [4, 384], strides = [1, 1]} : vector<4x512xf32> to vector<4x384xf32>
    %cst_11 = arith.constant dense<0.000000e+00> : vector<8x384xf32>
    %16 = tpu.matmul %14, %15, %cst_11 {dimension_numbers = #tpu.dot_dimension_numbers<[1], [0], [0], [1], [0, 0, 1, 1], [], []>} : vector<8x4xf32>, vector<4x384xf32>, vector<8x384xf32> -> vector<8x384xf32>
    %17 = arith.addf %12, %16 : vector<8x384xf32>
    %c3 = arith.constant 3 : index
    %c0_12 = arith.constant 0 : index
    %c0_13 = arith.constant 0 : index
    %18 = vector.load %arg1[%c3, %c0_12, %c0_13] : memref<9x8x4xf32, #tpu.memory_space<vmem>>, vector<1x8x4xf32>
    %19 = vector.shape_cast %18 : vector<1x8x4xf32> to vector<8x4xf32>
    %20 = vector.extract_strided_slice %1 {offsets = [0, 18], sizes = [4, 384], strides = [1, 1]} : vector<4x512xf32> to vector<4x384xf32>
    %cst_14 = arith.constant dense<0.000000e+00> : vector<8x384xf32>
    %21 = tpu.matmul %19, %20, %cst_14 {dimension_numbers = #tpu.dot_dimension_numbers<[1], [0], [0], [1], [0, 0, 1, 1], [], []>} : vector<8x4xf32>, vector<4x384xf32>, vector<8x384xf32> -> vector<8x384xf32>
    %22 = arith.addf %17, %21 : vector<8x384xf32>
    %c4 = arith.constant 4 : index
    %c0_15 = arith.constant 0 : index
    %c0_16 = arith.constant 0 : index
    %23 = vector.load %arg1[%c4, %c0_15, %c0_16] : memref<9x8x4xf32, #tpu.memory_space<vmem>>, vector<1x8x4xf32>
    %24 = vector.shape_cast %23 : vector<1x8x4xf32> to vector<8x4xf32>
    %25 = vector.extract_strided_slice %1 {offsets = [0, 19], sizes = [4, 384], strides = [1, 1]} : vector<4x512xf32> to vector<4x384xf32>
    %cst_17 = arith.constant dense<0.000000e+00> : vector<8x384xf32>
    %26 = tpu.matmul %24, %25, %cst_17 {dimension_numbers = #tpu.dot_dimension_numbers<[1], [0], [0], [1], [0, 0, 1, 1], [], []>} : vector<8x4xf32>, vector<4x384xf32>, vector<8x384xf32> -> vector<8x384xf32>
    %27 = arith.addf %22, %26 : vector<8x384xf32>
    %c5 = arith.constant 5 : index
    %c0_18 = arith.constant 0 : index
    %c0_19 = arith.constant 0 : index
    %28 = vector.load %arg1[%c5, %c0_18, %c0_19] : memref<9x8x4xf32, #tpu.memory_space<vmem>>, vector<1x8x4xf32>
    %29 = vector.shape_cast %28 : vector<1x8x4xf32> to vector<8x4xf32>
    %30 = vector.extract_strided_slice %1 {offsets = [0, 20], sizes = [4, 384], strides = [1, 1]} : vector<4x512xf32> to vector<4x384xf32>
    %cst_20 = arith.constant dense<0.000000e+00> : vector<8x384xf32>
    %31 = tpu.matmul %29, %30, %cst_20 {dimension_numbers = #tpu.dot_dimension_numbers<[1], [0], [0], [1], [0, 0, 1, 1], [], []>} : vector<8x4xf32>, vector<4x384xf32>, vector<8x384xf32> -> vector<8x384xf32>
    %32 = arith.addf %27, %31 : vector<8x384xf32>
    %c6 = arith.constant 6 : index
    %c0_21 = arith.constant 0 : index
    %c0_22 = arith.constant 0 : index
    %33 = vector.load %arg1[%c6, %c0_21, %c0_22] : memref<9x8x4xf32, #tpu.memory_space<vmem>>, vector<1x8x4xf32>
    %34 = vector.shape_cast %33 : vector<1x8x4xf32> to vector<8x4xf32>
    %35 = vector.extract_strided_slice %1 {offsets = [0, 36], sizes = [4, 384], strides = [1, 1]} : vector<4x512xf32> to vector<4x384xf32>
    %cst_23 = arith.constant dense<0.000000e+00> : vector<8x384xf32>
    %36 = tpu.matmul %34, %35, %cst_23 {dimension_numbers = #tpu.dot_dimension_numbers<[1], [0], [0], [1], [0, 0, 1, 1], [], []>} : vector<8x4xf32>, vector<4x384xf32>, vector<8x384xf32> -> vector<8x384xf32>
    %37 = arith.addf %32, %36 : vector<8x384xf32>
    %c7 = arith.constant 7 : index
    %c0_24 = arith.constant 0 : index
    %c0_25 = arith.constant 0 : index
    %38 = vector.load %arg1[%c7, %c0_24, %c0_25] : memref<9x8x4xf32, #tpu.memory_space<vmem>>, vector<1x8x4xf32>
    %39 = vector.shape_cast %38 : vector<1x8x4xf32> to vector<8x4xf32>
    %40 = vector.extract_strided_slice %1 {offsets = [0, 37], sizes = [4, 384], strides = [1, 1]} : vector<4x512xf32> to vector<4x384xf32>
    %cst_26 = arith.constant dense<0.000000e+00> : vector<8x384xf32>
    %41 = tpu.matmul %39, %40, %cst_26 {dimension_numbers = #tpu.dot_dimension_numbers<[1], [0], [0], [1], [0, 0, 1, 1], [], []>} : vector<8x4xf32>, vector<4x384xf32>, vector<8x384xf32> -> vector<8x384xf32>
    %42 = arith.addf %37, %41 : vector<8x384xf32>
    %c8 = arith.constant 8 : index
    %c0_27 = arith.constant 0 : index
    %c0_28 = arith.constant 0 : index
    %43 = vector.load %arg1[%c8, %c0_27, %c0_28] : memref<9x8x4xf32, #tpu.memory_space<vmem>>, vector<1x8x4xf32>
    %44 = vector.shape_cast %43 : vector<1x8x4xf32> to vector<8x4xf32>
    %45 = vector.extract_strided_slice %1 {offsets = [0, 38], sizes = [4, 384], strides = [1, 1]} : vector<4x512xf32> to vector<4x384xf32>
    %cst_29 = arith.constant dense<0.000000e+00> : vector<8x384xf32>
    %46 = tpu.matmul %44, %45, %cst_29 {dimension_numbers = #tpu.dot_dimension_numbers<[1], [0], [0], [1], [0, 0, 1, 1], [], []>} : vector<8x4xf32>, vector<4x384xf32>, vector<8x384xf32> -> vector<8x384xf32>
    %47 = arith.addf %42, %46 : vector<8x384xf32>
    %c0_30 = arith.constant 0 : index
    %c0_31 = arith.constant 0 : index
    %48 = vector.load %arg2[%c0_30, %c0_31] : memref<8x1xf32, #tpu.memory_space<vmem>>, vector<8x1xf32>
    %49 = vector.broadcast %48 : vector<8x1xf32> to vector<8x384xf32>
    %50 = arith.addf %47, %49 : vector<8x384xf32>
    %cst_32 = arith.constant 0.000000e+00 : f32
    %51 = vector.broadcast %cst_32 : f32 to vector<8x384xf32>
    %52 = arith.maximumf %50, %51 : vector<8x384xf32>
    %c0_33 = arith.constant 0 : index
    %c0_34 = arith.constant 0 : index
    %c0_35 = arith.constant 0 : index
    %53 = vector.load %arg4[%c0_33, %c0_34, %c0_35] : memref<1x8x384xf32, #tpu.memory_space<vmem>>, vector<1x8x384xf32>
    %54 = vector.shape_cast %53 : vector<1x8x384xf32> to vector<8x384xf32>
    %55 = vector.shape_cast %52 : vector<8x384xf32> to vector<1x8x384xf32>
    tpu.vector_store %arg4[%c0_33, %c0_34, %c0_35], %55 {strides = array<i32>} : memref<1x8x384xf32, #tpu.memory_space<vmem>>, vector<1x8x384xf32>,
    return
  }
  func.func @transform_0(%arg0: i32) -> (i32, i32, i32) {
    %c0_i32 = arith.constant 0 : i32
    %c0_i32_0 = arith.constant 0 : i32
    %c0_i32_1 = arith.constant 0 : i32
    %c0_i32_2 = arith.constant 0 : i32
    return %c0_i32, %c0_i32_0, %c0_i32_1 : i32, i32, i32
  }
  func.func @transform_1(%arg0: i32) -> (i32, i32) {
    %c0_i32 = arith.constant 0 : i32
    %c0_i32_0 = arith.constant 0 : i32
    %c0_i32_1 = arith.constant 0 : i32
    return %c0_i32, %c0_i32_0 : i32, i32
  }
  func.func @transform_2(%arg0: i32) -> (i32, i32, i32) {
    %c0_i32 = arith.constant 0 : i32
    %c0_i32_0 = arith.constant 0 : i32
    %c0_i32_1 = arith.constant 0 : i32
    return %arg0, %c0_i32, %c0_i32_0 : i32, i32, i32
  }
  func.func @transform_3(%arg0: i32) -> (i32, i32, i32) {
    %c0_i32 = arith.constant 0 : i32
    %c0_i32_0 = arith.constant 0 : i32
    %c0_i32_1 = arith.constant 0 : i32
    return %arg0, %c0_i32, %c0_i32_0 : i32, i32, i32
  }
}

</mosaic_0001>

<llo_original>
// kernel: conv_cell_forward.1
$region0: #{conv_cell_forward.1}
  #allocation0 [shape = 'u32[]', space=smem, size = 0x4, offset = 0x4, fixed_abs, tag = 'smem constant byte address 0x4 - core index']
  #allocation1 [shape = 'u32[144,128]{1,0:T(1,128)}', space=vmem, size = 0x12000, scoped, tag = 'internal scratch']
  %s0 = inlined_call_operand.vmem [shape: f32[9,8,4], index: 0, kind: input, shape index: {}]
  %s1 = inlined_call_operand.vmem [shape: f32[8,1], index: 1, kind: input, shape index: {}]
  %s2 = inlined_call_operand.vmem [shape: f32[2,4,512], index: 2, kind: input, shape index: {}]
  %s3 = inlined_call_operand.vmem [shape: f32[2,8,384], index: 3, kind: output, shape index: {}]
  %s4 = sld [smem:[#allocation0]]
  $region45: #{conv_cell_forward.1} parent=0
    _
  %s6 = ssub.s32 1, %s4
  %s7 = scalar_select 0, %s6, %s4
  loop: start=0, step=1, limit=4
  $region2: #{conv_cell_forward.1} parent=0 // loop_pre_header
    _
  $region3: #{conv_cell_forward.1} parent=0 // loop_header
    %s9 = sphi 0, %s13
    %p10 = scmp.ge.s32.totalorder %s9, 4
    %s17 = sphi 0, %s17
    %s19 = sphi 0, %s17
    %s20 = sphi 0, %s19
    %s34 = sphi 0, %s20
    %s38 = sphi 0, %s38
    %s40 = sphi 0, %s38
    %s41 = sphi 0, %s40
    %s55 = sphi 0, %s41
    %s61 = sphi 0, %s63
    %s64 = sphi 0, %s61
    %s65 = sphi 0, %s64
    %s81 = sphi 0, %s65
    %s87 = sphi 0, %s89
    %s90 = sphi 0, %s87
    %s91 = sphi 0, %s90
    %s107 = sphi 0, %s91
  $region4: #{conv_cell_forward.1} parent=0 // loop_header_branch
    %12 = sbr.rel (%p10) target = $region8
  $region5: #{conv_cell_forward.1} parent=0 // loop_body
    %s14 = ssub.s32 %s9, 1
    %s15 = ssub.s32 %s9, 2
    %s16 = sadd.s32 %s9, 1
    %s18 = sadd.s32 %s17, 1
    %p21 = scmp.eq.s32.totalorder %s9, 1
    %p22 = scmp.ne.s32.totalorder %s17, %s19
    %p23 = scmp.eq.s32.totalorder %s9, 0
    %p24 = por %p22, %p23
    %p25 = scmp.ne.s32.totalorder %s17, %s19
    %p26 = scmp.eq.s32.totalorder %s14, 1
    %p27 = por %p25, %p26
    %p28 = scmp.ne.s32.totalorder %s19, %s20
    %p29 = scmp.eq.s32.totalorder %s14, 0
    %p30 = por %p28, %p29
    %p31 = scmp.ne.s32.totalorder %s19, %s20
    %p32 = scmp.eq.s32.totalorder %s15, 1
    %p33 = por %p31, %p32
    %p35 = scmp.ne.s32.totalorder %s20, %s34
    %p36 = scmp.eq.s32.totalorder %s15, 0
    %p37 = por %p35, %p36
    %s39 = sadd.s32 %s38, 1
    %p42 = scmp.eq.s32.totalorder %s9, 1
    %p43 = scmp.ne.s32.totalorder %s38, %s40
    %p44 = scmp.eq.s32.totalorder %s9, 0
    %p45 = por %p43, %p44
    %p46 = scmp.ne.s32.totalorder %s38, %s40
    %p47 = scmp.eq.s32.totalorder %s14, 1
    %p48 = por %p46, %p47
    %p49 = scmp.ne.s32.totalorder %s40, %s41
    %p50 = scmp.eq.s32.totalorder %s14, 0
    %p51 = por %p49, %p50
    %p52 = scmp.ne.s32.totalorder %s40, %s41
    %p53 = scmp.eq.s32.totalorder %s15, 1
    %p54 = por %p52, %p53
    %p56 = scmp.ne.s32.totalorder %s41, %s55
    %p57 = scmp.eq.s32.totalorder %s15, 0
    %p58 = por %p56, %p57
    %s59 = ssub.s32 %s9, %s16
    %p60 = scmp.eq.s32.totalorder %s59, 0
    %s62 = sadd.s32 %s61, 1
    %s63 = scalar_select %p60, %s61, %s62
    %p66 = pneg %p60
    %p67 = scmp.eq.s32.totalorder %s9, 1
    %p68 = por %p66, %p67
    %p69 = scmp.ne.s32.totalorder %s61, %s64
    %p70 = scmp.eq.s32.totalorder %s9, 0
    %p71 = por %p69, %p70
    %p72 = scmp.ne.s32.totalorder %s61, %s64
    %p73 = scmp.eq.s32.totalorder %s14, 1
    %p74 = por %p72, %p73
    %p75 = scmp.ne.s32.totalorder %s64, %s65
    %p76 = scmp.eq.s32.totalorder %s14, 0
    %p77 = por %p75, %p76
    %p78 = scmp.ne.s32.totalorder %s64, %s65
    %p79 = scmp.eq.s32.totalorder %s15, 1
    %p80 = por %p78, %p79
    %p82 = scmp.ne.s32.totalorder %s65, %s81
    %p83 = scmp.eq.s32.totalorder %s15, 0
    %p84 = por %p82, %p83
    %s85 = ssub.s32 %s9, %s16
    %p86 = scmp.eq.s32.totalorder %s85, 0
    %s88 = sadd.s32 %s87, 1
    %s89 = scalar_select %p86, %s87, %s88
    %p92 = pneg %p86
    %p93 = scmp.eq.s32.totalorder %s9, 1
    %p94 = por %p92, %p93
    %p95 = scmp.ne.s32.totalorder %s87, %s90
    %p96 = scmp.eq.s32.totalorder %s9, 0
    %p97 = por %p95, %p96
    %p98 = scmp.ne.s32.totalorder %s87, %s90
    %p99 = scmp.eq.s32.totalorder %s14, 1
    %p100 = por %p98, %p99
    %p101 = scmp.ne.s32.totalorder %s90, %s91
    %p102 = scmp.eq.s32.totalorder %s14, 0
    %p103 = por %p101, %p102
    %p104 = scmp.ne.s32.totalorder %s90, %s91
    %p105 = scmp.eq.s32.totalorder %s15, 1
    %p106 = por %p104, %p105
    %p108 = scmp.ne.s32.totalorder %s91, %s107
    %p109 = scmp.eq.s32.totalorder %s15, 0
    %p110 = por %p108, %p109
    %p111 = scmp.le.s32.totalorder 1, %s9
    %p112 = scmp.lt.s32.totalorder %s9, 3
    %p113 = pnand %p111, %p112
    %p114 = pneg %p113
    // Predicated region
    $region9: #{conv_cell_forward.1} parent=5 // pred_check
      _
    $region10: #{conv_cell_forward.1} parent=5 // pred_check_branch
      %116 = sbr.rel (%p113) target = $region12
    $region11: #{conv_cell_forward.1} parent=5 // pred_region
      %s117 = ssub.s32 %s9, 1
      // Predicated region
      $region13: #{conv_cell_forward.1} parent=11 // pred_check
        %p118 = pneg %p30
      $region14: #{conv_cell_forward.1} parent=11 // pred_check_branch
        %120 = sbr.rel (%p118) target = $region16
      $region15: #{conv_cell_forward.1} parent=11 // pred_region
        _
      $region16: #{conv_cell_forward.1} parent=11 // pred_fallthru
        _
      // Predicated region
      $region17: #{conv_cell_forward.1} parent=11 // pred_check
        %p121 = pneg %p51
      $region18: #{conv_cell_forward.1} parent=11 // pred_check_branch
        %123 = sbr.rel (%p121) target = $region20
      $region19: #{conv_cell_forward.1} parent=11 // pred_region
        _
      $region20: #{conv_cell_forward.1} parent=11 // pred_fallthru
        _
    $region12: #{conv_cell_forward.1} parent=5 // pred_fallthru
      _
    %p124 = scmp.lt.s32.totalorder %s9, 2
    // Predicated region
    $region21: #{conv_cell_forward.1} parent=5 // pred_check
      %p125 = pneg %p124
    $region22: #{conv_cell_forward.1} parent=5 // pred_check_branch
      %127 = sbr.rel (%p125) target = $region24
    $region23: #{conv_cell_forward.1} parent=5 // pred_region
      // Predicated region
      $region25: #{conv_cell_forward.1} parent=23 // pred_check
        %p128 = pneg %p71
      $region26: #{conv_cell_forward.1} parent=23 // pred_check_branch
        %130 = sbr.rel (%p128) target = $region28
      $region27: #{conv_cell_forward.1} parent=23 // pred_region
        %p131 = scmp.lt.s32.totalorder %s9, 1
        %s132 = scalar_select %p131, %s9, 1
        %s133 = smul.addr %s132, 4
        %s134 = smul.addr %s133, 4
        %s135 = scalar_lea.vmem %s2, %s134
      $region28: #{conv_cell_forward.1} parent=23 // pred_fallthru
        _
    $region24: #{conv_cell_forward.1} parent=5 // pred_fallthru
      _
    %p136 = scmp.le.s32.totalorder 1, %s9
    %p137 = scmp.lt.s32.totalorder %s9, 3
    %p138 = pnand %p136, %p137
    %p139 = pneg %p138
    // Predicated region
    $region29: #{conv_cell_forward.1} parent=5 // pred_check
      _
    $region30: #{conv_cell_forward.1} parent=5 // pred_check_branch
      %141 = sbr.rel (%p138) target = $region32
    $region31: #{conv_cell_forward.1} parent=5 // pred_region
      %s142 = ssub.s32 %s9, 1
      %p143 = pneg %p30
      %p144 = pneg %p27
      %p145 = pneg %p51
      %p146 = pneg %p48
      %p147 = scmp.lt.s32.totalorder %s14, 1
      %s148 = scalar_select %p147, %s14, 1
      %s149 = smul.addr %s148, 4
      %s150 = smul.addr %s149, 4
      %s151 = scalar_lea.vmem %s2, %s150
      %p152 = pneg %p77
      %p153 = pneg %p74
      %p154 = pneg %p103
      %p155 = pneg %p100
      %p156 = scmp.lt.s32.totalorder %s14, 1
      %s157 = scalar_select %p156, %s14, 1
      %s158 = smul.addr %s157, 3
      %s159 = smul.addr %s158, 8
      %s160 = scalar_lea.vmem %s3, %s159
      %p161 = scmp.lt.s32.totalorder %s14, 1
      %s162 = scalar_select %p161, %s14, 1
      %s163 = smul.addr %s162, 4
      %s164 = smul.addr %s163, 4
      %s165 = scalar_lea.vmem %s2, %s164
      %p166 = scmp.lt.s32.totalorder %s14, 1
      %s167 = scalar_select %p166, %s14, 1
      %s168 = smul.addr %s167, 3
      %s169 = smul.addr %s168, 8
      %s170 = scalar_lea.vmem %s3, %s169
      %v171 = vld [vmem:[%s165] sm:$0xff]
      %v172 = vld [vmem:[%s165 + $0x8] sm:$0xff]
      %v173 = vld [vmem:[%s0] sm:$0xff]
      %s174 = scalar_lea.vmem %s0, 8
      %v175 = vld [vmem:[%s174] sm:$0xff]
      %v178 = vcombine.high %v171, %v171
      %v179 = vcombine.high %v172, %v172
      %180 = vrot.lane.b32.xlu0 %v171, 127
      %v181 = vpop.permute.xlu0 %180
      %182 = vrot.lane.b32.xlu0 %v178, 127
      %v183 = vpop.permute.xlu0 %182
      %184 = vrot.lane.b32.xlu0 %v172, 127
      %v185 = vpop.permute.xlu0 %184
      %186 = vrot.lane.b32.xlu0 %v179, 127
      %v187 = vpop.permute.xlu0 %186
      %vm188 = vcmask 1039360
      %v189 = vsel %vm188, %v181, %v183
      %v190 = vsel %vm188, %v183, %v185
      %v191 = vsel %vm188, %v185, %v187
      %vm192 = vcmask 31744
      %v194 = vsel %vm192, %v175, 0
      %vm196 = vcmask 1043456
      %v197 = vsel %vm196, %v189, 0
      %v199 = vsel %vm196, %v190, 0
      %v201 = vsel %vm196, %v191, 0
      %203 = vmatprep.subr.mxu0 %v199
      %204 = vmatpush1.msra.mxu0 %v197
      %205 = vmatprep.subr.mxu0 0.0
      %206 = vmatpush1.msra.mxu0 0.0
      %207 = vmatprep.subr.mxu0 0.0
      %208 = vmatpush1.msra.mxu0 0.0
      %209 = vmatprep.subr.mxu0 0.0
      %210 = vmatpush1.msra.mxu0 0.0
      %211 = vmatprep.subr.mxu0 0.0
      %212 = vmatpush1.msra.mxu0 0.0
      %213 = vmatprep.subr.mxu0 0.0
      %214 = vmatpush1.msra.mxu0 0.0
      %215 = vmatprep.subr.mxu0 0.0
      %216 = vmatpush1.msra.mxu0 0.0
      %217 = vmatprep.subr.mxu0 0.0
      %218 = vmatpush1.msra.mxu0 0.0
      %219 = vmatprep.subr.mxu0 0.0
      %220 = vmatpush1.msra.mxu0 0.0
      %221 = vmatprep.subr.mxu0 0.0
      %222 = vmatpush1.msra.mxu0 0.0
      %223 = vmatprep.subr.mxu0 0.0
      %224 = vmatpush1.msra.mxu0 0.0
      %225 = vmatprep.subr.mxu0 0.0
      %226 = vmatpush1.msra.mxu0 0.0
      %227 = vmatprep.subr.mxu0 0.0
      %228 = vmatpush1.msra.mxu0 0.0
      %229 = vmatprep.subr.mxu0 0.0
      %230 = vmatpush1.msra.mxu0 0.0
      %231 = vmatprep.subr.mxu0 0.0
      %232 = vmatpush1.msra.mxu0 0.0
      %233 = vmatprep.subr.mxu0 0.0
      %234 = vmatpush1.msra.mxu0 0.0
      %235 = vmatprep.subr.mxu0 0.0
      %236 = vmatpush1.msra.mxu0 0.0
      %237 = vmatprep.subr.mxu0 0.0
      %238 = vmatpush1.msra.mxu0 0.0
      %239 = vmatprep.subr.mxu0 0.0
      %240 = vmatpush1.msra.mxu0 0.0
      %241 = vmatprep.subr.mxu0 0.0
      %242 = vmatpush1.msra.mxu0 0.0
      %243 = vmatprep.subr.mxu0 0.0
      %244 = vmatpush1.msra.mxu0 0.0
      %245 = vmatprep.subr.mxu0 0.0
      %246 = vmatpush1.msra.mxu0 0.0
      %247 = vmatprep.subr.mxu0 0.0
      %248 = vmatpush1.msra.mxu0 0.0
      %249 = vmatprep.subr.mxu0 0.0
      %250 = vmatpush1.msra.mxu0 0.0
      %251 = vmatprep.subr.mxu0 0.0
      %252 = vmatpush1.msra.mxu0 0.0
      %253 = vmatprep.subr.mxu0 0.0
      %254 = vmatpush1.msra.mxu0 0.0
      %255 = vmatprep.subr.mxu0 0.0
      %256 = vmatpush1.msra.mxu0 0.0
      %257 = vmatprep.subr.mxu0 0.0
      %258 = vmatpush1.msra.mxu0 0.0
      %259 = vmatprep.subr.mxu0 0.0
      %260 = vmatpush1.msra.mxu0 0.0
      %261 = vmatprep.subr.mxu0 0.0
      %262 = vmatpush1.msra.mxu0 0.0
      %263 = vmatprep.subr.mxu0 0.0
      %264 = vmatpush1.msra.mxu0 0.0
      %265 = vmatprep.subr.mxu0 0.0
      %266 = vmatpush1.msra.mxu0 0.0
      %267 = vmatprep.mubr.f32.mxu0 0.0
      %268 = vmatmul.mubr.f32.gmra.mrb[0].mxu0 %v194
      %v269 = vpop.f32.mrb[0].mxu0
      %v270 = vadd.f32 0.0, %v269
      %v271 = vpop.f32.mrb[0].mxu0
      %v272 = vadd.f32 0.0, %v271
      %273 = vdwg.mxu0
      %274 = vmatprep.subr.mxu0 0.0
      %275 = vmatpush1.msra.mxu0 %v201
      %276 = vmatprep.subr.mxu0 0.0
      %277 = vmatpush1.msra.mxu0 0.0
      %278 = vmatprep.subr.mxu0 0.0
      %279 = vmatpush1.msra.mxu0 0.0
      %280 = vmatprep.subr.mxu0 0.0
      %281 = vmatpush1.msra.mxu0 0.0
      %282 = vmatprep.subr.mxu0 0.0
      %283 = vmatpush1.msra.mxu0 0.0
      %284 = vmatprep.subr.mxu0 0.0
      %285 = vmatpush1.msra.mxu0 0.0
      %286 = vmatprep.subr.mxu0 0.0
      %287 = vmatpush1.msra.mxu0 0.0
      %288 = vmatprep.subr.mxu0 0.0
      %289 = vmatpush1.msra.mxu0 0.0
      %290 = vmatprep.subr.mxu0 0.0
      %291 = vmatpush1.msra.mxu0 0.0
      %292 = vmatprep.subr.mxu0 0.0
      %293 = vmatpush1.msra.mxu0 0.0
      %294 = vmatprep.subr.mxu0 0.0
      %295 = vmatpush1.msra.mxu0 0.0
      %296 = vmatprep.subr.mxu0 0.0
      %297 = vmatpush1.msra.mxu0 0.0
      %298 = vmatprep.subr.mxu0 0.0
      %299 = vmatpush1.msra.mxu0 0.0
      %300 = vmatprep.subr.mxu0 0.0
      %301 = vmatpush1.msra.mxu0 0.0
      %302 = vmatprep.subr.mxu0 0.0
      %303 = vmatpush1.msra.mxu0 0.0
      %304 = vmatprep.subr.mxu0 0.0
      %305 = vmatpush1.msra.mxu0 0.0
      %306 = vmatprep.subr.mxu0 0.0
      %307 = vmatpush1.msra.mxu0 0.0
      %308 = vmatprep.subr.mxu0 0.0
      %309 = vmatpush1.msra.mxu0 0.0
      %310 = vmatprep.subr.mxu0 0.0
      %311 = vmatpush1.msra.mxu0 0.0
      %312 = vmatprep.subr.mxu0 0.0
      %313 = vmatpush1.msra.mxu0 0.0
      %314 = vmatprep.subr.mxu0 0.0
      %315 = vmatpush1.msra.mxu0 0.0
      %316 = vmatprep.subr.mxu0 0.0
      %317 = vmatpush1.msra.mxu0 0.0
      %318 = vmatprep.subr.mxu0 0.0
      %319 = vmatpush1.msra.mxu0 0.0
      %320 = vmatprep.subr.mxu0 0.0
      %321 = vmatpush1.msra.mxu0 0.0
      %322 = vmatprep.subr.mxu0 0.0
      %323 = vmatpush1.msra.mxu0 0.0
      %324 = vmatprep.subr.mxu0 0.0
      %325 = vmatpush1.msra.mxu0 0.0
      %326 = vmatprep.subr.mxu0 0.0
      %327 = vmatpush1.msra.mxu0 0.0
      %328 = vmatprep.subr.mxu0 0.0
      %329 = vmatpush1.msra.mxu0 0.0
      %330 = vmatprep.subr.mxu0 0.0
      %331 = vmatpush1.msra.mxu0 0.0
      %332 = vmatprep.subr.mxu0 0.0
      %333 = vmatpush1.msra.mxu0 0.0
      %334 = vmatprep.subr.mxu0 0.0
      %335 = vmatpush1.msra.mxu0 0.0
      %336 = vmatprep.subr.mxu0 0.0
      %337 = vmatpush1.msra.mxu0 0.0
      %338 = vmatprep.mubr.f32.mxu0 0.0
      %339 = vmatmul.mubr.f32.gmra.mrb[0].mxu0 %v194
      %v340 = vpop.f32.mrb[0].mxu0
      %v341 = vadd.f32 0.0, %v340
      %v342 = vpop.f32.mrb[0].mxu0
      %343 = vdwg.mxu0
      %v345 = vsel %vm192, %v173, 0
      %v347 = vsel %vm196, %v171, 0
      %v349 = vsel %vm196, %v178, 0
      %v351 = vsel %vm196, %v172, 0
      %353 = vmatprep.subr.mxu0 %v349
      %354 = vmatpush1.msra.mxu0 %v347
      %355 = vmatprep.subr.mxu0 0.0
      %356 = vmatpush1.msra.mxu0 0.0
      %357 = vmatprep.subr.mxu0 0.0
      %358 = vmatpush1.msra.mxu0 0.0
      %359 = vmatprep.subr.mxu0 0.0
      %360 = vmatpush1.msra.mxu0 0.0
      %361 = vmatprep.subr.mxu0 0.0
      %362 = vmatpush1.msra.mxu0 0.0
      %363 = vmatprep.subr.mxu0 0.0
      %364 = vmatpush1.msra.mxu0 0.0
      %365 = vmatprep.subr.mxu0 0.0
      %366 = vmatpush1.msra.mxu0 0.0
      %367 = vmatprep.subr.mxu0 0.0
      %368 = vmatpush1.msra.mxu0 0.0
      %369 = vmatprep.subr.mxu0 0.0
      %370 = vmatpush1.msra.mxu0 0.0
      %371 = vmatprep.subr.mxu0 0.0
      %372 = vmatpush1.msra.mxu0 0.0
      %373 = vmatprep.subr.mxu0 0.0
      %374 = vmatpush1.msra.mxu0 0.0
      %375 = vmatprep.subr.mxu0 0.0
      %376 = vmatpush1.msra.mxu0 0.0
      %377 = vmatprep.subr.mxu0 0.0
      %378 = vmatpush1.msra.mxu0 0.0
      %379 = vmatprep.subr.mxu0 0.0
      %380 = vmatpush1.msra.mxu0 0.0
      %381 = vmatprep.subr.mxu0 0.0
      %382 = vmatpush1.msra.mxu0 0.0
      %383 = vmatprep.subr.mxu0 0.0
      %384 = vmatpush1.msra.mxu0 0.0
      %385 = vmatprep.subr.mxu0 0.0
      %386 = vmatpush1.msra.mxu0 0.0
      %387 = vmatprep.subr.mxu0 0.0
      %388 = vmatpush1.msra.mxu0 0.0
      %389 = vmatprep.subr.mxu0 0.0
      %390 = vmatpush1.msra.mxu0 0.0
      %391 = vmatprep.subr.mxu0 0.0
      %392 = vmatpush1.msra.mxu0 0.0
      %393 = vmatprep.subr.mxu0 0.0
      %394 = vmatpush1.msra.mxu0 0.0
      %395 = vmatprep.subr.mxu0 0.0
      %396 = vmatpush1.msra.mxu0 0.0
      %397 = vmatprep.subr.mxu0 0.0
      %398 = vmatpush1.msra.mxu0 0.0
      %399 = vmatprep.subr.mxu0 0.0
      %400 = vmatpush1.msra.mxu0 0.0
      %401 = vmatprep.subr.mxu0 0.0
      %402 = vmatpush1.msra.mxu0 0.0
      %403 = vmatprep.subr.mxu0 0.0
      %404 = vmatpush1.msra.mxu0 0.0
      %405 = vmatprep.subr.mxu0 0.0
      %406 = vmatpush1.msra.mxu0 0.0
      %407 = vmatprep.subr.mxu0 0.0
      %408 = vmatpush1.msra.mxu0 0.0
      %409 = vmatprep.subr.mxu0 0.0
      %410 = vmatpush1.msra.mxu0 0.0
      %411 = vmatprep.subr.mxu0 0.0
      %412 = vmatpush1.msra.mxu0 0.0
      %413 = vmatprep.subr.mxu0 0.0
      %414 = vmatpush1.msra.mxu0 0.0
      %415 = vmatprep.subr.mxu0 0.0
      %416 = vmatpush1.msra.mxu0 0.0
      %417 = vmatprep.mubr.f32.mxu0 0.0
      %418 = vmatmul.mubr.f32.gmra.mrb[0].mxu0 %v345
      %v419 = vpop.f32.mrb[0].mxu0
      %v420 = vadd.f32 %v270, %v419
      %v421 = vpop.f32.mrb[0].mxu0
      %v422 = vadd.f32 %v272, %v421
      %423 = vdwg.mxu0
      %424 = vmatprep.subr.mxu0 0.0
      %425 = vmatpush1.msra.mxu0 %v351
      %426 = vmatprep.subr.mxu0 0.0
      %427 = vmatpush1.msra.mxu0 0.0
      %428 = vmatprep.subr.mxu0 0.0
      %429 = vmatpush1.msra.mxu0 0.0
      %430 = vmatprep.subr.mxu0 0.0
      %431 = vmatpush1.msra.mxu0 0.0
      %432 = vmatprep.subr.mxu0 0.0
      %433 = vmatpush1.msra.mxu0 0.0
      %434 = vmatprep.subr.mxu0 0.0
      %435 = vmatpush1.msra.mxu0 0.0
      %436 = vmatprep.subr.mxu0 0.0
      %437 = vmatpush1.msra.mxu0 0.0
      %438 = vmatprep.subr.mxu0 0.0
      %439 = vmatpush1.msra.mxu0 0.0
      %440 = vmatprep.subr.mxu0 0.0
      %441 = vmatpush1.msra.mxu0 0.0
      %442 = vmatprep.subr.mxu0 0.0
      %443 = vmatpush1.msra.mxu0 0.0
      %444 = vmatprep.subr.mxu0 0.0
      %445 = vmatpush1.msra.mxu0 0.0
      %446 = vmatprep.subr.mxu0 0.0
      %447 = vmatpush1.msra.mxu0 0.0
      %448 = vmatprep.subr.mxu0 0.0
      %449 = vmatpush1.msra.mxu0 0.0
      %450 = vmatprep.subr.mxu0 0.0
      %451 = vmatpush1.msra.mxu0 0.0
      %452 = vmatprep.subr.mxu0 0.0
      %453 = vmatpush1.msra.mxu0 0.0
      %454 = vmatprep.subr.mxu0 0.0
      %455 = vmatpush1.msra.mxu0 0.0
      %456 = vmatprep.subr.mxu0 0.0
      %457 = vmatpush1.msra.mxu0 0.0
      %458 = vmatprep.subr.mxu0 0.0
      %459 = vmatpush1.msra.mxu0 0.0
      %460 = vmatprep.subr.mxu0 0.0
      %461 = vmatpush1.msra.mxu0 0.0
      %462 = vmatprep.subr.mxu0 0.0
      %463 = vmatpush1.msra.mxu0 0.0
      %464 = vmatprep.subr.mxu0 0.0
      %465 = vmatpush1.msra.mxu0 0.0
      %466 = vmatprep.subr.mxu0 0.0
      %467 = vmatpush1.msra.mxu0 0.0
      %468 = vmatprep.subr.mxu0 0.0
      %469 = vmatpush1.msra.mxu0 0.0
      %470 = vmatprep.subr.mxu0 0.0
      %471 = vmatpush1.msra.mxu0 0.0
      %472 = vmatprep.subr.mxu0 0.0
      %473 = vmatpush1.msra.mxu0 0.0
      %474 = vmatprep.subr.mxu0 0.0
      %475 = vmatpush1.msra.mxu0 0.0
      %476 = vmatprep.subr.mxu0 0.0
      %477 = vmatpush1.msra.mxu0 0.0
      %478 = vmatprep.subr.mxu0 0.0
      %479 = vmatpush1.msra.mxu0 0.0
      %480 = vmatprep.subr.mxu0 0.0
      %481 = vmatpush1.msra.mxu0 0.0
      %482 = vmatprep.subr.mxu0 0.0
      %483 = vmatpush1.msra.mxu0 0.0
      %484 = vmatprep.subr.mxu0 0.0
      %485 = vmatpush1.msra.mxu0 0.0
      %486 = vmatprep.subr.mxu0 0.0
      %487 = vmatpush1.msra.mxu0 0.0
      %488 = vmatprep.mubr.f32.mxu0 0.0
      %489 = vmatmul.mubr.f32.gmra.mrb[0].mxu0 %v345
      %v490 = vpop.f32.mrb[0].mxu0
      %v491 = vadd.f32 %v341, %v490
      %v492 = vpop.f32.mrb[0].mxu0
      %493 = vdwg.mxu0
      %s494 = scalar_lea.vmem %s0, 16
      %v495 = vld [vmem:[%s494] sm:$0xff]
      %496 = vrot.lane.b32.xlu0 %v171, 126
      %v497 = vpop.permute.xlu0 %496
      %498 = vrot.lane.b32.xlu0 %v178, 126
      %v499 = vpop.permute.xlu0 %498
      %500 = vrot.lane.b32.xlu0 %v172, 126
      %v501 = vpop.permute.xlu0 %500
      %502 = vrot.lane.b32.xlu0 %v179, 126
      %v503 = vpop.permute.xlu0 %502
      %vm504 = vcmask 1031168
      %v505 = vsel %vm504, %v497, %v499
      %v506 = vsel %vm504, %v499, %v501
      %v507 = vsel %vm504, %v501, %v503
      %v509 = vsel %vm192, %v495, 0
      %v511 = vsel %vm196, %v505, 0
      %v513 = vsel %vm196, %v506, 0
      %v515 = vsel %vm196, %v507, 0
      %517 = vmatprep.subr.mxu0 %v513
      %518 = vmatpush1.msra.mxu0 %v511
      %519 = vmatprep.subr.mxu0 0.0
      %520 = vmatpush1.msra.mxu0 0.0
      %521 = vmatprep.subr.mxu0 0.0
      %522 = vmatpush1.msra.mxu0 0.0
      %523 = vmatprep.subr.mxu0 0.0
      %524 = vmatpush1.msra.mxu0 0.0
      %525 = vmatprep.subr.mxu0 0.0
      %526 = vmatpush1.msra.mxu0 0.0
      %527 = vmatprep.subr.mxu0 0.0
      %528 = vmatpush1.msra.mxu0 0.0
      %529 = vmatprep.subr.mxu0 0.0
      %530 = vmatpush1.msra.mxu0 0.0
      %531 = vmatprep.subr.mxu0 0.0
      %532 = vmatpush1.msra.mxu0 0.0
      %533 = vmatprep.subr.mxu0 0.0
      %534 = vmatpush1.msra.mxu0 0.0
      %535 = vmatprep.subr.mxu0 0.0
      %536 = vmatpush1.msra.mxu0 0.0
      %537 = vmatprep.subr.mxu0 0.0
      %538 = vmatpush1.msra.mxu0 0.0
      %539 = vmatprep.subr.mxu0 0.0
      %540 = vmatpush1.msra.mxu0 0.0
      %541 = vmatprep.subr.mxu0 0.0
      %542 = vmatpush1.msra.mxu0 0.0
      %543 = vmatprep.subr.mxu0 0.0
      %544 = vmatpush1.msra.mxu0 0.0
      %545 = vmatprep.subr.mxu0 0.0
      %546 = vmatpush1.msra.mxu0 0.0
      %547 = vmatprep.subr.mxu0 0.0
      %548 = vmatpush1.msra.mxu0 0.0
      %549 = vmatprep.subr.mxu0 0.0
      %550 = vmatpush1.msra.mxu0 0.0
      %551 = vmatprep.subr.mxu0 0.0
      %552 = vmatpush1.msra.mxu0 0.0
      %553 = vmatprep.subr.mxu0 0.0
      %554 = vmatpush1.msra.mxu0 0.0
      %555 = vmatprep.subr.mxu0 0.0
      %556 = vmatpush1.msra.mxu0 0.0
      %557 = vmatprep.subr.mxu0 0.0
      %558 = vmatpush1.msra.mxu0 0.0
      %559 = vmatprep.subr.mxu0 0.0
      %560 = vmatpush1.msra.mxu0 0.0
      %561 = vmatprep.subr.mxu0 0.0
      %562 = vmatpush1.msra.mxu0 0.0
      %563 = vmatprep.subr.mxu0 0.0
      %564 = vmatpush1.msra.mxu0 0.0
      %565 = vmatprep.subr.mxu0 0.0
      %566 = vmatpush1.msra.mxu0 0.0
      %567 = vmatprep.subr.mxu0 0.0
      %568 = vmatpush1.msra.mxu0 0.0
      %569 = vmatprep.subr.mxu0 0.0
      %570 = vmatpush1.msra.mxu0 0.0
      %571 = vmatprep.subr.mxu0 0.0
      %572 = vmatpush1.msra.mxu0 0.0
      %573 = vmatprep.subr.mxu0 0.0
      %574 = vmatpush1.msra.mxu0 0.0
      %575 = vmatprep.subr.mxu0 0.0
      %576 = vmatpush1.msra.mxu0 0.0
      %577 = vmatprep.subr.mxu0 0.0
      %578 = vmatpush1.msra.mxu0 0.0
      %579 = vmatprep.subr.mxu0 0.0
      %580 = vmatpush1.msra.mxu0 0.0
      %581 = vmatprep.mubr.f32.mxu0 0.0
      %582 = vmatmul.mubr.f32.gmra.mrb[0].mxu0 %v509
      %v583 = vpop.f32.mrb[0].mxu0
      %v584 = vadd.f32 0.0, %v583
      %v585 = vpop.f32.mrb[0].mxu0
      %v586 = vadd.f32 0.0, %v585
      %587 = vdwg.mxu0
      %588 = vmatprep.subr.mxu0 0.0
      %589 = vmatpush1.msra.mxu0 %v515
      %590 = vmatprep.subr.mxu0 0.0
      %591 = vmatpush1.msra.mxu0 0.0
      %592 = vmatprep.subr.mxu0 0.0
      %593 = vmatpush1.msra.mxu0 0.0
      %594 = vmatprep.subr.mxu0 0.0
      %595 = vmatpush1.msra.mxu0 0.0
      %596 = vmatprep.subr.mxu0 0.0
      %597 = vmatpush1.msra.mxu0 0.0
      %598 = vmatprep.subr.mxu0 0.0
      %599 = vmatpush1.msra.mxu0 0.0
      %600 = vmatprep.subr.mxu0 0.0
      %601 = vmatpush1.msra.mxu0 0.0
      %602 = vmatprep.subr.mxu0 0.0
      %603 = vmatpush1.msra.mxu0 0.0
      %604 = vmatprep.subr.mxu0 0.0
      %605 = vmatpush1.msra.mxu0 0.0
      %606 = vmatprep.subr.mxu0 0.0
      %607 = vmatpush1.msra.mxu0 0.0
      %608 = vmatprep.subr.mxu0 0.0
      %609 = vmatpush1.msra.mxu0 0.0
      %610 = vmatprep.subr.mxu0 0.0
      %611 = vmatpush1.msra.mxu0 0.0
      %612 = vmatprep.subr.mxu0 0.0
      %613 = vmatpush1.msra.mxu0 0.0
      %614 = vmatprep.subr.mxu0 0.0
      %615 = vmatpush1.msra.mxu0 0.0
      %616 = vmatprep.subr.mxu0 0.0
      %617 = vmatpush1.msra.mxu0 0.0
      %618 = vmatprep.subr.mxu0 0.0
      %619 = vmatpush1.msra.mxu0 0.0
      %620 = vmatprep.subr.mxu0 0.0
      %621 = vmatpush1.msra.mxu0 0.0
      %622 = vmatprep.subr.mxu0 0.0
      %623 = vmatpush1.msra.mxu0 0.0
      %624 = vmatprep.subr.mxu0 0.0
      %625 = vmatpush1.msra.mxu0 0.0
      %626 = vmatprep.subr.mxu0 0.0
      %627 = vmatpush1.msra.mxu0 0.0
      %628 = vmatprep.subr.mxu0 0.0
      %629 = vmatpush1.msra.mxu0 0.0
      %630 = vmatprep.subr.mxu0 0.0
      %631 = vmatpush1.msra.mxu0 0.0
      %632 = vmatprep.subr.mxu0 0.0
      %633 = vmatpush1.msra.mxu0 0.0
      %634 = vmatprep.subr.mxu0 0.0
      %635 = vmatpush1.msra.mxu0 0.0
      %636 = vmatprep.subr.mxu0 0.0
      %637 = vmatpush1.msra.mxu0 0.0
      %638 = vmatprep.subr.mxu0 0.0
      %639 = vmatpush1.msra.mxu0 0.0
      %640 = vmatprep.subr.mxu0 0.0
      %641 = vmatpush1.msra.mxu0 0.0
      %642 = vmatprep.subr.mxu0 0.0
      %643 = vmatpush1.msra.mxu0 0.0
      %644 = vmatprep.subr.mxu0 0.0
      %645 = vmatpush1.msra.mxu0 0.0
      %646 = vmatprep.subr.mxu0 0.0
      %647 = vmatpush1.msra.mxu0 0.0
      %648 = vmatprep.subr.mxu0 0.0
      %649 = vmatpush1.msra.mxu0 0.0
      %650 = vmatprep.subr.mxu0 0.0
      %651 = vmatpush1.msra.mxu0 0.0
      %652 = vmatprep.mubr.f32.mxu0 0.0
      %653 = vmatmul.mubr.f32.gmra.mrb[0].mxu0 %v509
      %v654 = vpop.f32.mrb[0].mxu0
      %v655 = vadd.f32 0.0, %v654
      %v656 = vpop.f32.mrb[0].mxu0
      %657 = vdwg.mxu0
      %v658 = vadd.f32 %v420, %v584
      %v659 = vadd.f32 %v422, %v586
      %v660 = vadd.f32 %v491, %v655
      %s661 = scalar_lea.vmem %s0, 24
      %v662 = vld [vmem:[%s661] sm:$0xff]
      %663 = vrot.lane.b32.xlu0 %v171, 110
      %v664 = vpop.permute.xlu0 %663
      %665 = vrot.lane.b32.xlu0 %v178, 110
      %v666 = vpop.permute.xlu0 %665
      %667 = vrot.lane.b32.xlu0 %v172, 110
      %v668 = vpop.permute.xlu0 %667
      %669 = vrot.lane.b32.xlu0 %v179, 110
      %v670 = vpop.permute.xlu0 %669
      %vm671 = vcmask 900096
      %v672 = vsel %vm671, %v664, %v666
      %v673 = vsel %vm671, %v666, %v668
      %v674 = vsel %vm671, %v668, %v670
      %v676 = vsel %vm192, %v662, 0
      %v678 = vsel %vm196, %v672, 0
      %v680 = vsel %vm196, %v673, 0
      %v682 = vsel %vm196, %v674, 0
      %684 = vmatprep.subr.mxu0 %v680
      %685 = vmatpush1.msra.mxu0 %v678
      %686 = vmatprep.subr.mxu0 0.0
      %687 = vmatpush1.msra.mxu0 0.0
      %688 = vmatprep.subr.mxu0 0.0
      %689 = vmatpush1.msra.mxu0 0.0
      %690 = vmatprep.subr.mxu0 0.0
      %691 = vmatpush1.msra.mxu0 0.0
      %692 = vmatprep.subr.mxu0 0.0
      %693 = vmatpush1.msra.mxu0 0.0
      %694 = vmatprep.subr.mxu0 0.0
      %695 = vmatpush1.msra.mxu0 0.0
      %696 = vmatprep.subr.mxu0 0.0
      %697 = vmatpush1.msra.mxu0 0.0
      %698 = vmatprep.subr.mxu0 0.0
      %699 = vmatpush1.msra.mxu0 0.0
      %700 = vmatprep.subr.mxu0 0.0
      %701 = vmatpush1.msra.mxu0 0.0
      %702 = vmatprep.subr.mxu0 0.0
      %703 = vmatpush1.msra.mxu0 0.0
      %704 = vmatprep.subr.mxu0 0.0
      %705 = vmatpush1.msra.mxu0 0.0
      %706 = vmatprep.subr.mxu0 0.0
      %707 = vmatpush1.msra.mxu0 0.0
      %708 = vmatprep.subr.mxu0 0.0
      %709 = vmatpush1.msra.mxu0 0.0
      %710 = vmatprep.subr.mxu0 0.0
      %711 = vmatpush1.msra.mxu0 0.0
      %712 = vmatprep.subr.mxu0 0.0
      %713 = vmatpush1.msra.mxu0 0.0
      %714 = vmatprep.subr.mxu0 0.0
      %715 = vmatpush1.msra.mxu0 0.0
      %716 = vmatprep.subr.mxu0 0.0
      %717 = vmatpush1.msra.mxu0 0.0
      %718 = vmatprep.subr.mxu0 0.0
      %719 = vmatpush1.msra.mxu0 0.0
      %720 = vmatprep.subr.mxu0 0.0
      %721 = vmatpush1.msra.mxu0 0.0
      %722 = vmatprep.subr.mxu0 0.0
      %723 = vmatpush1.msra.mxu0 0.0
      %724 = vmatprep.subr.mxu0 0.0
      %725 = vmatpush1.msra.mxu0 0.0
      %726 = vmatprep.subr.mxu0 0.0
      %727 = vmatpush1.msra.mxu0 0.0
      %728 = vmatprep.subr.mxu0 0.0
      %729 = vmatpush1.msra.mxu0 0.0
      %730 = vmatprep.subr.mxu0 0.0
      %731 = vmatpush1.msra.mxu0 0.0
      %732 = vmatprep.subr.mxu0 0.0
      %733 = vmatpush1.msra.mxu0 0.0
      %734 = vmatprep.subr.mxu0 0.0
      %735 = vmatpush1.msra.mxu0 0.0
      %736 = vmatprep.subr.mxu0 0.0
      %737 = vmatpush1.msra.mxu0 0.0
      %738 = vmatprep.subr.mxu0 0.0
      %739 = vmatpush1.msra.mxu0 0.0
      %740 = vmatprep.subr.mxu0 0.0
      %741 = vmatpush1.msra.mxu0 0.0
      %742 = vmatprep.subr.mxu0 0.0
      %743 = vmatpush1.msra.mxu0 0.0
      %744 = vmatprep.subr.mxu0 0.0
      %745 = vmatpush1.msra.mxu0 0.0
      %746 = vmatprep.subr.mxu0 0.0
      %747 = vmatpush1.msra.mxu0 0.0
      %748 = vmatprep.mubr.f32.mxu0 0.0
      %749 = vmatmul.mubr.f32.gmra.mrb[0].mxu0 %v676
      %v750 = vpop.f32.mrb[0].mxu0
      %v751 = vadd.f32 0.0, %v750
      %v752 = vpop.f32.mrb[0].mxu0
      %v753 = vadd.f32 0.0, %v752
      %754 = vdwg.mxu0
      %755 = vmatprep.subr.mxu0 0.0
      %756 = vmatpush1.msra.mxu0 %v682
      %757 = vmatprep.subr.mxu0 0.0
      %758 = vmatpush1.msra.mxu0 0.0
      %759 = vmatprep.subr.mxu0 0.0
      %760 = vmatpush1.msra.mxu0 0.0
      %761 = vmatprep.subr.mxu0 0.0
      %762 = vmatpush1.msra.mxu0 0.0
      %763 = vmatprep.subr.mxu0 0.0
      %764 = vmatpush1.msra.mxu0 0.0
      %765 = vmatprep.subr.mxu0 0.0
      %766 = vmatpush1.msra.mxu0 0.0
      %767 = vmatprep.subr.mxu0 0.0
      %768 = vmatpush1.msra.mxu0 0.0
      %769 = vmatprep.subr.mxu0 0.0
      %770 = vmatpush1.msra.mxu0 0.0
      %771 = vmatprep.subr.mxu0 0.0
      %772 = vmatpush1.msra.mxu0 0.0
      %773 = vmatprep.subr.mxu0 0.0
      %774 = vmatpush1.msra.mxu0 0.0
      %775 = vmatprep.subr.mxu0 0.0
      %776 = vmatpush1.msra.mxu0 0.0
      %777 = vmatprep.subr.mxu0 0.0
      %778 = vmatpush1.msra.mxu0 0.0
      %779 = vmatprep.subr.mxu0 0.0
      %780 = vmatpush1.msra.mxu0 0.0
      %781 = vmatprep.subr.mxu0 0.0
      %782 = vmatpush1.msra.mxu0 0.0
      %783 = vmatprep.subr.mxu0 0.0
      %784 = vmatpush1.msra.mxu0 0.0
      %785 = vmatprep.subr.mxu0 0.0
      %786 = vmatpush1.msra.mxu0 0.0
      %787 = vmatprep.subr.mxu0 0.0
      %788 = vmatpush1.msra.mxu0 0.0
      %789 = vmatprep.subr.mxu0 0.0
      %790 = vmatpush1.msra.mxu0 0.0
      %791 = vmatprep.subr.mxu0 0.0
      %792 = vmatpush1.msra.mxu0 0.0
      %793 = vmatprep.subr.mxu0 0.0
      %794 = vmatpush1.msra.mxu0 0.0
      %795 = vmatprep.subr.mxu0 0.0
      %796 = vmatpush1.msra.mxu0 0.0
      %797 = vmatprep.subr.mxu0 0.0
      %798 = vmatpush1.msra.mxu0 0.0
      %799 = vmatprep.subr.mxu0 0.0
      %800 = vmatpush1.msra.mxu0 0.0
      %801 = vmatprep.subr.mxu0 0.0
      %802 = vmatpush1.msra.mxu0 0.0
      %803 = vmatprep.subr.mxu0 0.0
      %804 = vmatpush1.msra.mxu0 0.0
      %805 = vmatprep.subr.mxu0 0.0
      %806 = vmatpush1.msra.mxu0 0.0
      %807 = vmatprep.subr.mxu0 0.0
      %808 = vmatpush1.msra.mxu0 0.0
      %809 = vmatprep.subr.mxu0 0.0
      %810 = vmatpush1.msra.mxu0 0.0
      %811 = vmatprep.subr.mxu0 0.0
      %812 = vmatpush1.msra.mxu0 0.0
      %813 = vmatprep.subr.mxu0 0.0
      %814 = vmatpush1.msra.mxu0 0.0
      %815 = vmatprep.subr.mxu0 0.0
      %816 = vmatpush1.msra.mxu0 0.0
      %817 = vmatprep.subr.mxu0 0.0
      %818 = vmatpush1.msra.mxu0 0.0
      %819 = vmatprep.mubr.f32.mxu0 0.0
      %820 = vmatmul.mubr.f32.gmra.mrb[0].mxu0 %v676
      %v821 = vpop.f32.mrb[0].mxu0
      %v822 = vadd.f32 0.0, %v821
      %v823 = vpop.f32.mrb[0].mxu0
      %824 = vdwg.mxu0
      %v825 = vadd.f32 %v658, %v751
      %v826 = vadd.f32 %v659, %v753
      %v827 = vadd.f32 %v660, %v822
      %s828 = scalar_lea.vmem %s0, 32
      %v829 = vld [vmem:[%s828] sm:$0xff]
      %830 = vrot.lane.b32.xlu0 %v171, 109
      %v831 = vpop.permute.xlu0 %830
      %832 = vrot.lane.b32.xlu0 %v178, 109
      %v833 = vpop.permute.xlu0 %832
      %834 = vrot.lane.b32.xlu0 %v172, 109
      %v835 = vpop.permute.xlu0 %834
      %836 = vrot.lane.b32.xlu0 %v179, 109
      %v837 = vpop.permute.xlu0 %836
      %vm838 = vcmask 891904
      %v839 = vsel %vm838, %v831, %v833
      %v840 = vsel %vm838, %v833, %v835
      %v841 = vsel %vm838, %v835, %v837
      %v843 = vsel %vm192, %v829, 0
      %v845 = vsel %vm196, %v839, 0
      %v847 = vsel %vm196, %v840, 0
      %v849 = vsel %vm196, %v841, 0
      %851 = vmatprep.subr.mxu0 %v847
      %852 = vmatpush1.msra.mxu0 %v845
      %853 = vmatprep.subr.mxu0 0.0
      %854 = vmatpush1.msra.mxu0 0.0
      %855 = vmatprep.subr.mxu0 0.0
      %856 = vmatpush1.msra.mxu0 0.0
      %857 = vmatprep.subr.mxu0 0.0
      %858 = vmatpush1.msra.mxu0 0.0
      %859 = vmatprep.subr.mxu0 0.0
      %860 = vmatpush1.msra.mxu0 0.0
      %861 = vmatprep.subr.mxu0 0.0
      %862 = vmatpush1.msra.mxu0 0.0
      %863 = vmatprep.subr.mxu0 0.0
      %864 = vmatpush1.msra.mxu0 0.0
      %865 = vmatprep.subr.mxu0 0.0
      %866 = vmatpush1.msra.mxu0 0.0
      %867 = vmatprep.subr.mxu0 0.0
      %868 = vmatpush1.msra.mxu0 0.0
      %869 = vmatprep.subr.mxu0 0.0
      %870 = vmatpush1.msra.mxu0 0.0
      %871 = vmatprep.subr.mxu0 0.0
      %872 = vmatpush1.msra.mxu0 0.0
      %873 = vmatprep.subr.mxu0 0.0
      %874 = vmatpush1.msra.mxu0 0.0
      %875 = vmatprep.subr.mxu0 0.0
      %876 = vmatpush1.msra.mxu0 0.0
      %877 = vmatprep.subr.mxu0 0.0
      %878 = vmatpush1.msra.mxu0 0.0
      %879 = vmatprep.subr.mxu0 0.0
      %880 = vmatpush1.msra.mxu0 0.0
      %881 = vmatprep.subr.mxu0 0.0
      %882 = vmatpush1.msra.mxu0 0.0
      %883 = vmatprep.subr.mxu0 0.0
      %884 = vmatpush1.msra.mxu0 0.0
      %885 = vmatprep.subr.mxu0 0.0
      %886 = vmatpush1.msra.mxu0 0.0
      %887 = vmatprep.subr.mxu0 0.0
      %888 = vmatpush1.msra.mxu0 0.0
      %889 = vmatprep.subr.mxu0 0.0
      %890 = vmatpush1.msra.mxu0 0.0
      %891 = vmatprep.subr.mxu0 0.0
      %892 = vmatpush1.msra.mxu0 0.0
      %893 = vmatprep.subr.mxu0 0.0
      %894 = vmatpush1.msra.mxu0 0.0
      %895 = vmatprep.subr.mxu0 0.0
      %896 = vmatpush1.msra.mxu0 0.0
      %897 = vmatprep.subr.mxu0 0.0
      %898 = vmatpush1.msra.mxu0 0.0
      %899 = vmatprep.subr.mxu0 0.0
      %900 = vmatpush1.msra.mxu0 0.0
      %901 = vmatprep.subr.mxu0 0.0
      %902 = vmatpush1.msra.mxu0 0.0
      %903 = vmatprep.subr.mxu0 0.0
      %904 = vmatpush1.msra.mxu0 0.0
      %905 = vmatprep.subr.mxu0 0.0
      %906 = vmatpush1.msra.mxu0 0.0
      %907 = vmatprep.subr.mxu0 0.0
      %908 = vmatpush1.msra.mxu0 0.0
      %909 = vmatprep.subr.mxu0 0.0
      %910 = vmatpush1.msra.mxu0 0.0
      %911 = vmatprep.subr.mxu0 0.0
      %912 = vmatpush1.msra.mxu0 0.0
      %913 = vmatprep.subr.mxu0 0.0
      %914 = vmatpush1.msra.mxu0 0.0
      %915 = vmatprep.mubr.f32.mxu0 0.0
      %916 = vmatmul.mubr.f32.gmra.mrb[0].mxu0 %v843
      %v917 = vpop.f32.mrb[0].mxu0
      %v918 = vadd.f32 0.0, %v917
      %v919 = vpop.f32.mrb[0].mxu0
      %v920 = vadd.f32 0.0, %v919
      %921 = vdwg.mxu0
      %922 = vmatprep.subr.mxu0 0.0
      %923 = vmatpush1.msra.mxu0 %v849
      %924 = vmatprep.subr.mxu0 0.0
      %925 = vmatpush1.msra.mxu0 0.0
      %926 = vmatprep.subr.mxu0 0.0
      %927 = vmatpush1.msra.mxu0 0.0
      %928 = vmatprep.subr.mxu0 0.0
      %929 = vmatpush1.msra.mxu0 0.0
      %930 = vmatprep.subr.mxu0 0.0
      %931 = vmatpush1.msra.mxu0 0.0
      %932 = vmatprep.subr.mxu0 0.0
      %933 = vmatpush1.msra.mxu0 0.0
      %934 = vmatprep.subr.mxu0 0.0
      %935 = vmatpush1.msra.mxu0 0.0
      %936 = vmatprep.subr.mxu0 0.0
      %937 = vmatpush1.msra.mxu0 0.0
      %938 = vmatprep.subr.mxu0 0.0
      %939 = vmatpush1.msra.mxu0 0.0
      %940 = vmatprep.subr.mxu0 0.0
      %941 = vmatpush1.msra.mxu0 0.0
      %942 = vmatprep.subr.mxu0 0.0
      %943 = vmatpush1.msra.mxu0 0.0
      %944 = vmatprep.subr.mxu0 0.0
      %945 = vmatpush1.msra.mxu0 0.0
      %946 = vmatprep.subr.mxu0 0.0
      %947 = vmatpush1.msra.mxu0 0.0
      %948 = vmatprep.subr.mxu0 0.0
      %949 = vmatpush1.msra.mxu0 0.0
      %950 = vmatprep.subr.mxu0 0.0
      %951 = vmatpush1.msra.mxu0 0.0
      %952 = vmatprep.subr.mxu0 0.0
      %953 = vmatpush1.msra.mxu0 0.0
      %954 = vmatprep.subr.mxu0 0.0
      %955 = vmatpush1.msra.mxu0 0.0
      %956 = vmatprep.subr.mxu0 0.0
      %957 = vmatpush1.msra.mxu0 0.0
      %958 = vmatprep.subr.mxu0 0.0
      %959 = vmatpush1.msra.mxu0 0.0
      %960 = vmatprep.subr.mxu0 0.0
      %961 = vmatpush1.msra.mxu0 0.0
      %962 = vmatprep.subr.mxu0 0.0
      %963 = vmatpush1.msra.mxu0 0.0
      %964 = vmatprep.subr.mxu0 0.0
      %965 = vmatpush1.msra.mxu0 0.0
      %966 = vmatprep.subr.mxu0 0.0
      %967 = vmatpush1.msra.mxu0 0.0
      %968 = vmatprep.subr.mxu0 0.0
      %969 = vmatpush1.msra.mxu0 0.0
      %970 = vmatprep.subr.mxu0 0.0
      %971 = vmatpush1.msra.mxu0 0.0
      %972 = vmatprep.subr.mxu0 0.0
      %973 = vmatpush1.msra.mxu0 0.0
      %974 = vmatprep.subr.mxu0 0.0
      %975 = vmatpush1.msra.mxu0 0.0
      %976 = vmatprep.subr.mxu0 0.0
      %977 = vmatpush1.msra.mxu0 0.0
      %978 = vmatprep.subr.mxu0 0.0
      %979 = vmatpush1.msra.mxu0 0.0
      %980 = vmatprep.subr.mxu0 0.0
      %981 = vmatpush1.msra.mxu0 0.0
      %982 = vmatprep.subr.mxu0 0.0
      %983 = vmatpush1.msra.mxu0 0.0
      %984 = vmatprep.subr.mxu0 0.0
      %985 = vmatpush1.msra.mxu0 0.0
      %986 = vmatprep.mubr.f32.mxu0 0.0
      %987 = vmatmul.mubr.f32.gmra.mrb[0].mxu0 %v843
      %v988 = vpop.f32.mrb[0].mxu0
      %v989 = vadd.f32 0.0, %v988
      %v990 = vpop.f32.mrb[0].mxu0
      %991 = vdwg.mxu0
      %v992 = vadd.f32 %v825, %v918
      %v993 = vadd.f32 %v826, %v920
      %v994 = vadd.f32 %v827, %v989
      %s995 = scalar_lea.vmem %s0, 40
      %v996 = vld [vmem:[%s995] sm:$0xff]
      %997 = vrot.lane.b32.xlu0 %v171, 108
      %v998 = vpop.permute.xlu0 %997
      %999 = vrot.lane.b32.xlu0 %v178, 108
      %v1000 = vpop.permute.xlu0 %999
      %1001 = vrot.lane.b32.xlu0 %v172, 108
      %v1002 = vpop.permute.xlu0 %1001
      %1003 = vrot.lane.b32.xlu0 %v179, 108
      %v1004 = vpop.permute.xlu0 %1003
      %vm1005 = vcmask 883712
      %v1006 = vsel %vm1005, %v998, %v1000
      %v1007 = vsel %vm1005, %v1000, %v1002
      %v1008 = vsel %vm1005, %v1002, %v1004
      %v1010 = vsel %vm192, %v996, 0
      %v1012 = vsel %vm196, %v1006, 0
      %v1014 = vsel %vm196, %v1007, 0
      %v1016 = vsel %vm196, %v1008, 0
      %1018 = vmatprep.subr.mxu0 %v1014
      %1019 = vmatpush1.msra.mxu0 %v1012
      %1020 = vmatprep.subr.mxu0 0.0
      %1021 = vmatpush1.msra.mxu0 0.0
      %1022 = vmatprep.subr.mxu0 0.0
      %1023 = vmatpush1.msra.mxu0 0.0
      %1024 = vmatprep.subr.mxu0 0.0
      %1025 = vmatpush1.msra.mxu0 0.0
      %1026 = vmatprep.subr.mxu0 0.0
      %1027 = vmatpush1.msra.mxu0 0.0
      %1028 = vmatprep.subr.mxu0 0.0
      %1029 = vmatpush1.msra.mxu0 0.0
      %1030 = vmatprep.subr.mxu0 0.0
      %1031 = vmatpush1.msra.mxu0 0.0
      %1032 = vmatprep.subr.mxu0 0.0
      %1033 = vmatpush1.msra.mxu0 0.0
      %1034 = vmatprep.subr.mxu0 0.0
      %1035 = vmatpush1.msra.mxu0 0.0
      %1036 = vmatprep.subr.mxu0 0.0
      %1037 = vmatpush1.msra.mxu0 0.0
      %1038 = vmatprep.subr.mxu0 0.0
      %1039 = vmatpush1.msra.mxu0 0.0
      %1040 = vmatprep.subr.mxu0 0.0
      %1041 = vmatpush1.msra.mxu0 0.0
      %1042 = vmatprep.subr.mxu0 0.0
      %1043 = vmatpush1.msra.mxu0 0.0
      %1044 = vmatprep.subr.mxu0 0.0
      %1045 = vmatpush1.msra.mxu0 0.0
      %1046 = vmatprep.subr.mxu0 0.0
      %1047 = vmatpush1.msra.mxu0 0.0
      %1048 = vmatprep.subr.mxu0 0.0
      %1049 = vmatpush1.msra.mxu0 0.0
      %1050 = vmatprep.subr.mxu0 0.0
      %1051 = vmatpush1.msra.mxu0 0.0
      %1052 = vmatprep.subr.mxu0 0.0
      %1053 = vmatpush1.msra.mxu0 0.0
      %1054 = vmatprep.subr.mxu0 0.0
      %1055 = vmatpush1.msra.mxu0 0.0
      %1056 = vmatprep.subr.mxu0 0.0
      %1057 = vmatpush1.msra.mxu0 0.0
      %1058 = vmatprep.subr.mxu0 0.0
      %1059 = vmatpush1.msra.mxu0 0.0
      %1060 = vmatprep.subr.mxu0 0.0
      %1061 = vmatpush1.msra.mxu0 0.0
      %1062 = vmatprep.subr.mxu0 0.0
      %1063 = vmatpush1.msra.mxu0 0.0
      %1064 = vmatprep.subr.mxu0 0.0
      %1065 = vmatpush1.msra.mxu0 0.0
      %1066 = vmatprep.subr.mxu0 0.0
      %1067 = vmatpush1.msra.mxu0 0.0
      %1068 = vmatprep.subr.mxu0 0.0
      %1069 = vmatpush1.msra.mxu0 0.0
      %1070 = vmatprep.subr.mxu0 0.0
      %1071 = vmatpush1.msra.mxu0 0.0
      %1072 = vmatprep.subr.mxu0 0.0
      %1073 = vmatpush1.msra.mxu0 0.0
      %1074 = vmatprep.subr.mxu0 0.0
      %1075 = vmatpush1.msra.mxu0 0.0
      %1076 = vmatprep.subr.mxu0 0.0
      %1077 = vmatpush1.msra.mxu0 0.0
      %1078 = vmatprep.subr.mxu0 0.0
      %1079 = vmatpush1.msra.mxu0 0.0
      %1080 = vmatprep.subr.mxu0 0.0
      %1081 = vmatpush1.msra.mxu0 0.0
      %1082 = vmatprep.mubr.f32.mxu0 0.0
      %1083 = vmatmul.mubr.f32.gmra.mrb[0].mxu0 %v1010
      %v1084 = vpop.f32.mrb[0].mxu0
      %v1085 = vadd.f32 0.0, %v1084
      %v1086 = vpop.f32.mrb[0].mxu0
      %v1087 = vadd.f32 0.0, %v1086
      %1088 = vdwg.mxu0
      %1089 = vmatprep.subr.mxu0 0.0
      %1090 = vmatpush1.msra.mxu0 %v1016
      %1091 = vmatprep.subr.mxu0 0.0
      %1092 = vmatpush1.msra.mxu0 0.0
      %1093 = vmatprep.subr.mxu0 0.0
      %1094 = vmatpush1.msra.mxu0 0.0
      %1095 = vmatprep.subr.mxu0 0.0
      %1096 = vmatpush1.msra.mxu0 0.0
      %1097 = vmatprep.subr.mxu0 0.0
      %1098 = vmatpush1.msra.mxu0 0.0
      %1099 = vmatprep.subr.mxu0 0.0
      %1100 = vmatpush1.msra.mxu0 0.0
      %1101 = vmatprep.subr.mxu0 0.0
      %1102 = vmatpush1.msra.mxu0 0.0
      %1103 = vmatprep.subr.mxu0 0.0
      %1104 = vmatpush1.msra.mxu0 0.0
      %1105 = vmatprep.subr.mxu0 0.0
      %1106 = vmatpush1.msra.mxu0 0.0
      %1107 = vmatprep.subr.mxu0 0.0
      %1108 = vmatpush1.msra.mxu0 0.0
      %1109 = vmatprep.subr.mxu0 0.0
      %1110 = vmatpush1.msra.mxu0 0.0
      %1111 = vmatprep.subr.mxu0 0.0
      %1112 = vmatpush1.msra.mxu0 0.0
      %1113 = vmatprep.subr.mxu0 0.0
      %1114 = vmatpush1.msra.mxu0 0.0
      %1115 = vmatprep.subr.mxu0 0.0
      %1116 = vmatpush1.msra.mxu0 0.0
      %1117 = vmatprep.subr.mxu0 0.0
      %1118 = vmatpush1.msra.mxu0 0.0
      %1119 = vmatprep.subr.mxu0 0.0
      %1120 = vmatpush1.msra.mxu0 0.0
      %1121 = vmatprep.subr.mxu0 0.0
      %1122 = vmatpush1.msra.mxu0 0.0
      %1123 = vmatprep.subr.mxu0 0.0
      %1124 = vmatpush1.msra.mxu0 0.0
      %1125 = vmatprep.subr.mxu0 0.0
      %1126 = vmatpush1.msra.mxu0 0.0
      %1127 = vmatprep.subr.mxu0 0.0
      %1128 = vmatpush1.msra.mxu0 0.0
      %1129 = vmatprep.subr.mxu0 0.0
      %1130 = vmatpush1.msra.mxu0 0.0
      %1131 = vmatprep.subr.mxu0 0.0
      %1132 = vmatpush1.msra.mxu0 0.0
      %1133 = vmatprep.subr.mxu0 0.0
      %1134 = vmatpush1.msra.mxu0 0.0
      %1135 = vmatprep.subr.mxu0 0.0
      %1136 = vmatpush1.msra.mxu0 0.0
      %1137 = vmatprep.subr.mxu0 0.0
      %1138 = vmatpush1.msra.mxu0 0.0
      %1139 = vmatprep.subr.mxu0 0.0
      %1140 = vmatpush1.msra.mxu0 0.0
      %1141 = vmatprep.subr.mxu0 0.0
      %1142 = vmatpush1.msra.mxu0 0.0
      %1143 = vmatprep.subr.mxu0 0.0
      %1144 = vmatpush1.msra.mxu0 0.0
      %1145 = vmatprep.subr.mxu0 0.0
      %1146 = vmatpush1.msra.mxu0 0.0
      %1147 = vmatprep.subr.mxu0 0.0
      %1148 = vmatpush1.msra.mxu0 0.0
      %1149 = vmatprep.subr.mxu0 0.0
      %1150 = vmatpush1.msra.mxu0 0.0
      %1151 = vmatprep.subr.mxu0 0.0
      %1152 = vmatpush1.msra.mxu0 0.0
      %1153 = vmatprep.mubr.f32.mxu0 0.0
      %1154 = vmatmul.mubr.f32.gmra.mrb[0].mxu0 %v1010
      %v1155 = vpop.f32.mrb[0].mxu0
      %v1156 = vadd.f32 0.0, %v1155
      %v1157 = vpop.f32.mrb[0].mxu0
      %1158 = vdwg.mxu0
      %v1159 = vadd.f32 %v992, %v1085
      %v1160 = vadd.f32 %v993, %v1087
      %v1161 = vadd.f32 %v994, %v1156
      %s1162 = scalar_lea.vmem %s0, 48
      %v1163 = vld [vmem:[%s1162] sm:$0xff]
      %1164 = vrot.lane.b32.xlu0 %v171, 92
      %v1165 = vpop.permute.xlu0 %1164
      %1166 = vrot.lane.b32.xlu0 %v178, 92
      %v1167 = vpop.permute.xlu0 %1166
      %1168 = vrot.lane.b32.xlu0 %v172, 92
      %v1169 = vpop.permute.xlu0 %1168
      %1170 = vrot.lane.b32.xlu0 %v179, 92
      %v1171 = vpop.permute.xlu0 %1170
      %vm1172 = vcmask 752640
      %v1173 = vsel %vm1172, %v1165, %v1167
      %v1174 = vsel %vm1172, %v1167, %v1169
      %v1175 = vsel %vm1172, %v1169, %v1171
      %v1177 = vsel %vm192, %v1163, 0
      %v1179 = vsel %vm196, %v1173, 0
      %v1181 = vsel %vm196, %v1174, 0
      %v1183 = vsel %vm196, %v1175, 0
      %1185 = vmatprep.subr.mxu0 %v1181
      %1186 = vmatpush1.msra.mxu0 %v1179
      %1187 = vmatprep.subr.mxu0 0.0
      %1188 = vmatpush1.msra.mxu0 0.0
      %1189 = vmatprep.subr.mxu0 0.0
      %1190 = vmatpush1.msra.mxu0 0.0
      %1191 = vmatprep.subr.mxu0 0.0
      %1192 = vmatpush1.msra.mxu0 0.0
      %1193 = vmatprep.subr.mxu0 0.0
      %1194 = vmatpush1.msra.mxu0 0.0
      %1195 = vmatprep.subr.mxu0 0.0
      %1196 = vmatpush1.msra.mxu0 0.0
      %1197 = vmatprep.subr.mxu0 0.0
      %1198 = vmatpush1.msra.mxu0 0.0
      %1199 = vmatprep.subr.mxu0 0.0
      %1200 = vmatpush1.msra.mxu0 0.0
      %1201 = vmatprep.subr.mxu0 0.0
      %1202 = vmatpush1.msra.mxu0 0.0
      %1203 = vmatprep.subr.mxu0 0.0
      %1204 = vmatpush1.msra.mxu0 0.0
      %1205 = vmatprep.subr.mxu0 0.0
      %1206 = vmatpush1.msra.mxu0 0.0
      %1207 = vmatprep.subr.mxu0 0.0
      %1208 = vmatpush1.msra.mxu0 0.0
      %1209 = vmatprep.subr.mxu0 0.0
      %1210 = vmatpush1.msra.mxu0 0.0
      %1211 = vmatprep.subr.mxu0 0.0
      %1212 = vmatpush1.msra.mxu0 0.0
      %1213 = vmatprep.subr.mxu0 0.0
      %1214 = vmatpush1.msra.mxu0 0.0
      %1215 = vmatprep.subr.mxu0 0.0
      %1216 = vmatpush1.msra.mxu0 0.0
      %1217 = vmatprep.subr.mxu0 0.0
      %1218 = vmatpush1.msra.mxu0 0.0
      %1219 = vmatprep.subr.mxu0 0.0
      %1220 = vmatpush1.msra.mxu0 0.0
      %1221 = vmatprep.subr.mxu0 0.0
      %1222 = vmatpush1.msra.mxu0 0.0
      %1223 = vmatprep.subr.mxu0 0.0
      %1224 = vmatpush1.msra.mxu0 0.0
      %1225 = vmatprep.subr.mxu0 0.0
      %1226 = vmatpush1.msra.mxu0 0.0
      %1227 = vmatprep.subr.mxu0 0.0
      %1228 = vmatpush1.msra.mxu0 0.0
      %1229 = vmatprep.subr.mxu0 0.0
      %1230 = vmatpush1.msra.mxu0 0.0
      %1231 = vmatprep.subr.mxu0 0.0
      %1232 = vmatpush1.msra.mxu0 0.0
      %1233 = vmatprep.subr.mxu0 0.0
      %1234 = vmatpush1.msra.mxu0 0.0
      %1235 = vmatprep.subr.mxu0 0.0
      %1236 = vmatpush1.msra.mxu0 0.0
      %1237 = vmatprep.subr.mxu0 0.0
      %1238 = vmatpush1.msra.mxu0 0.0
      %1239 = vmatprep.subr.mxu0 0.0
      %1240 = vmatpush1.msra.mxu0 0.0
      %1241 = vmatprep.subr.mxu0 0.0
      %1242 = vmatpush1.msra.mxu0 0.0
      %1243 = vmatprep.subr.mxu0 0.0
      %1244 = vmatpush1.msra.mxu0 0.0
      %1245 = vmatprep.subr.mxu0 0.0
      %1246 = vmatpush1.msra.mxu0 0.0
      %1247 = vmatprep.subr.mxu0 0.0
      %1248 = vmatpush1.msra.mxu0 0.0
      %1249 = vmatprep.mubr.f32.mxu0 0.0
      %1250 = vmatmul.mubr.f32.gmra.mrb[0].mxu0 %v1177
      %v1251 = vpop.f32.mrb[0].mxu0
      %v1252 = vadd.f32 0.0, %v1251
      %v1253 = vpop.f32.mrb[0].mxu0
      %v1254 = vadd.f32 0.0, %v1253
      %1255 = vdwg.mxu0
      %1256 = vmatprep.subr.mxu0 0.0
      %1257 = vmatpush1.msra.mxu0 %v1183
      %1258 = vmatprep.subr.mxu0 0.0
      %1259 = vmatpush1.msra.mxu0 0.0
      %1260 = vmatprep.subr.mxu0 0.0
      %1261 = vmatpush1.msra.mxu0 0.0
      %1262 = vmatprep.subr.mxu0 0.0
      %1263 = vmatpush1.msra.mxu0 0.0
      %1264 = vmatprep.subr.mxu0 0.0
      %1265 = vmatpush1.msra.mxu0 0.0
      %1266 = vmatprep.subr.mxu0 0.0
      %1267 = vmatpush1.msra.mxu0 0.0
      %1268 = vmatprep.subr.mxu0 0.0
      %1269 = vmatpush1.msra.mxu0 0.0
      %1270 = vmatprep.subr.mxu0 0.0
      %1271 = vmatpush1.msra.mxu0 0.0
      %1272 = vmatprep.subr.mxu0 0.0
      %1273 = vmatpush1.msra.mxu0 0.0
      %1274 = vmatprep.subr.mxu0 0.0
      %1275 = vmatpush1.msra.mxu0 0.0
      %1276 = vmatprep.subr.mxu0 0.0
      %1277 = vmatpush1.msra.mxu0 0.0
      %1278 = vmatprep.subr.mxu0 0.0
      %1279 = vmatpush1.msra.mxu0 0.0
      %1280 = vmatprep.subr.mxu0 0.0
      %1281 = vmatpush1.msra.mxu0 0.0
      %1282 = vmatprep.subr.mxu0 0.0
      %1283 = vmatpush1.msra.mxu0 0.0
      %1284 = vmatprep.subr.mxu0 0.0
      %1285 = vmatpush1.msra.mxu0 0.0
      %1286 = vmatprep.subr.mxu0 0.0
      %1287 = vmatpush1.msra.mxu0 0.0
      %1288 = vmatprep.subr.mxu0 0.0
      %1289 = vmatpush1.msra.mxu0 0.0
      %1290 = vmatprep.subr.mxu0 0.0
      %1291 = vmatpush1.msra.mxu0 0.0
      %1292 = vmatprep.subr.mxu0 0.0
      %1293 = vmatpush1.msra.mxu0 0.0
      %1294 = vmatprep.subr.mxu0 0.0
      %1295 = vmatpush1.msra.mxu0 0.0
      %1296 = vmatprep.subr.mxu0 0.0
      %1297 = vmatpush1.msra.mxu0 0.0
      %1298 = vmatprep.subr.mxu0 0.0
      %1299 = vmatpush1.msra.mxu0 0.0
      %1300 = vmatprep.subr.mxu0 0.0
      %1301 = vmatpush1.msra.mxu0 0.0
      %1302 = vmatprep.subr.mxu0 0.0
      %1303 = vmatpush1.msra.mxu0 0.0
      %1304 = vmatprep.subr.mxu0 0.0
      %1305 = vmatpush1.msra.mxu0 0.0
      %1306 = vmatprep.subr.mxu0 0.0
      %1307 = vmatpush1.msra.mxu0 0.0
      %1308 = vmatprep.subr.mxu0 0.0
      %1309 = vmatpush1.msra.mxu0 0.0
      %1310 = vmatprep.subr.mxu0 0.0
      %1311 = vmatpush1.msra.mxu0 0.0
      %1312 = vmatprep.subr.mxu0 0.0
      %1313 = vmatpush1.msra.mxu0 0.0
      %1314 = vmatprep.subr.mxu0 0.0
      %1315 = vmatpush1.msra.mxu0 0.0
      %1316 = vmatprep.subr.mxu0 0.0
      %1317 = vmatpush1.msra.mxu0 0.0
      %1318 = vmatprep.subr.mxu0 0.0
      %1319 = vmatpush1.msra.mxu0 0.0
      %1320 = vmatprep.mubr.f32.mxu0 0.0
      %1321 = vmatmul.mubr.f32.gmra.mrb[0].mxu0 %v1177
      %v1322 = vpop.f32.mrb[0].mxu0
      %v1323 = vadd.f32 0.0, %v1322
      %v1324 = vpop.f32.mrb[0].mxu0
      %1325 = vdwg.mxu0
      %v1326 = vadd.f32 %v1159, %v1252
      %v1327 = vadd.f32 %v1160, %v1254
      %v1328 = vadd.f32 %v1161, %v1323
      %s1329 = scalar_lea.vmem %s0, 56
      %v1330 = vld [vmem:[%s1329] sm:$0xff]
      %1331 = vrot.lane.b32.xlu0 %v171, 91
      %v1332 = vpop.permute.xlu0 %1331
      %1333 = vrot.lane.b32.xlu0 %v178, 91
      %v1334 = vpop.permute.xlu0 %1333
      %1335 = vrot.lane.b32.xlu0 %v172, 91
      %v1336 = vpop.permute.xlu0 %1335
      %1337 = vrot.lane.b32.xlu0 %v179, 91
      %v1338 = vpop.permute.xlu0 %1337
      %vm1339 = vcmask 744448
      %v1340 = vsel %vm1339, %v1332, %v1334
      %v1341 = vsel %vm1339, %v1334, %v1336
      %v1342 = vsel %vm1339, %v1336, %v1338
      %v1344 = vsel %vm192, %v1330, 0
      %v1346 = vsel %vm196, %v1340, 0
      %v1348 = vsel %vm196, %v1341, 0
      %v1350 = vsel %vm196, %v1342, 0
      %1352 = vmatprep.subr.mxu0 %v1348
      %1353 = vmatpush1.msra.mxu0 %v1346
      %1354 = vmatprep.subr.mxu0 0.0
      %1355 = vmatpush1.msra.mxu0 0.0
      %1356 = vmatprep.subr.mxu0 0.0
      %1357 = vmatpush1.msra.mxu0 0.0
      %1358 = vmatprep.subr.mxu0 0.0
      %1359 = vmatpush1.msra.mxu0 0.0
      %1360 = vmatprep.subr.mxu0 0.0
      %1361 = vmatpush1.msra.mxu0 0.0
      %1362 = vmatprep.subr.mxu0 0.0
      %1363 = vmatpush1.msra.mxu0 0.0
      %1364 = vmatprep.subr.mxu0 0.0
      %1365 = vmatpush1.msra.mxu0 0.0
      %1366 = vmatprep.subr.mxu0 0.0
      %1367 = vmatpush1.msra.mxu0 0.0
      %1368 = vmatprep.subr.mxu0 0.0
      %1369 = vmatpush1.msra.mxu0 0.0
      %1370 = vmatprep.subr.mxu0 0.0
      %1371 = vmatpush1.msra.mxu0 0.0
      %1372 = vmatprep.subr.mxu0 0.0
      %1373 = vmatpush1.msra.mxu0 0.0
      %1374 = vmatprep.subr.mxu0 0.0
      %1375 = vmatpush1.msra.mxu0 0.0
      %1376 = vmatprep.subr.mxu0 0.0
      %1377 = vmatpush1.msra.mxu0 0.0
      %1378 = vmatprep.subr.mxu0 0.0
      %1379 = vmatpush1.msra.mxu0 0.0
      %1380 = vmatprep.subr.mxu0 0.0
      %1381 = vmatpush1.msra.mxu0 0.0
      %1382 = vmatprep.subr.mxu0 0.0
      %1383 = vmatpush1.msra.mxu0 0.0
      %1384 = vmatprep.subr.mxu0 0.0
      %1385 = vmatpush1.msra.mxu0 0.0
      %1386 = vmatprep.subr.mxu0 0.0
      %1387 = vmatpush1.msra.mxu0 0.0
      %1388 = vmatprep.subr.mxu0 0.0
      %1389 = vmatpush1.msra.mxu0 0.0
      %1390 = vmatprep.subr.mxu0 0.0
      %1391 = vmatpush1.msra.mxu0 0.0
      %1392 = vmatprep.subr.mxu0 0.0
      %1393 = vmatpush1.msra.mxu0 0.0
      %1394 = vmatprep.subr.mxu0 0.0
      %1395 = vmatpush1.msra.mxu0 0.0
      %1396 = vmatprep.subr.mxu0 0.0
      %1397 = vmatpush1.msra.mxu0 0.0
      %1398 = vmatprep.subr.mxu0 0.0
      %1399 = vmatpush1.msra.mxu0 0.0
      %1400 = vmatprep.subr.mxu0 0.0
      %1401 = vmatpush1.msra.mxu0 0.0
      %1402 = vmatprep.subr.mxu0 0.0
      %1403 = vmatpush1.msra.mxu0 0.0
      %1404 = vmatprep.subr.mxu0 0.0
      %1405 = vmatpush1.msra.mxu0 0.0
      %1406 = vmatprep.subr.mxu0 0.0
      %1407 = vmatpush1.msra.mxu0 0.0
      %1408 = vmatprep.subr.mxu0 0.0
      %1409 = vmatpush1.msra.mxu0 0.0
      %1410 = vmatprep.subr.mxu0 0.0
      %1411 = vmatpush1.msra.mxu0 0.0
      %1412 = vmatprep.subr.mxu0 0.0
      %1413 = vmatpush1.msra.mxu0 0.0
      %1414 = vmatprep.subr.mxu0 0.0
      %1415 = vmatpush1.msra.mxu0 0.0
      %1416 = vmatprep.mubr.f32.mxu0 0.0
      %1417 = vmatmul.mubr.f32.gmra.mrb[0].mxu0 %v1344
      %v1418 = vpop.f32.mrb[0].mxu0
      %v1419 = vadd.f32 0.0, %v1418
      %v1420 = vpop.f32.mrb[0].mxu0
      %v1421 = vadd.f32 0.0, %v1420
      %1422 = vdwg.mxu0
      %1423 = vmatprep.subr.mxu0 0.0
      %1424 = vmatpush1.msra.mxu0 %v1350
      %1425 = vmatprep.subr.mxu0 0.0
      %1426 = vmatpush1.msra.mxu0 0.0
      %1427 = vmatprep.subr.mxu0 0.0
      %1428 = vmatpush1.msra.mxu0 0.0
      %1429 = vmatprep.subr.mxu0 0.0
      %1430 = vmatpush1.msra.mxu0 0.0
      %1431 = vmatprep.subr.mxu0 0.0
      %1432 = vmatpush1.msra.mxu0 0.0
      %1433 = vmatprep.subr.mxu0 0.0
      %1434 = vmatpush1.msra.mxu0 0.0
      %1435 = vmatprep.subr.mxu0 0.0
      %1436 = vmatpush1.msra.mxu0 0.0
      %1437 = vmatprep.subr.mxu0 0.0
      %1438 = vmatpush1.msra.mxu0 0.0
      %1439 = vmatprep.subr.mxu0 0.0
      %1440 = vmatpush1.msra.mxu0 0.0
      %1441 = vmatprep.subr.mxu0 0.0
      %1442 = vmatpush1.msra.mxu0 0.0
      %1443 = vmatprep.subr.mxu0 0.0
      %1444 = vmatpush1.msra.mxu0 0.0
      %1445 = vmatprep.subr.mxu0 0.0
      %1446 = vmatpush1.msra.mxu0 0.0
      %1447 = vmatprep.subr.mxu0 0.0
      %1448 = vmatpush1.msra.mxu0 0.0
      %1449 = vmatprep.subr.mxu0 0.0
      %1450 = vmatpush1.msra.mxu0 0.0
      %1451 = vmatprep.subr.mxu0 0.0
      %1452 = vmatpush1.msra.mxu0 0.0
      %1453 = vmatprep.subr.mxu0 0.0
      %1454 = vmatpush1.msra.mxu0 0.0
      %1455 = vmatprep.subr.mxu0 0.0
      %1456 = vmatpush1.msra.mxu0 0.0
      %1457 = vmatprep.subr.mxu0 0.0
      %1458 = vmatpush1.msra.mxu0 0.0
      %1459 = vmatprep.subr.mxu0 0.0
      %1460 = vmatpush1.msra.mxu0 0.0
      %1461 = vmatprep.subr.mxu0 0.0
      %1462 = vmatpush1.msra.mxu0 0.0
      %1463 = vmatprep.subr.mxu0 0.0
      %1464 = vmatpush1.msra.mxu0 0.0
      %1465 = vmatprep.subr.mxu0 0.0
      %1466 = vmatpush1.msra.mxu0 0.0
      %1467 = vmatprep.subr.mxu0 0.0
      %1468 = vmatpush1.msra.mxu0 0.0
      %1469 = vmatprep.subr.mxu0 0.0
      %1470 = vmatpush1.msra.mxu0 0.0
      %1471 = vmatprep.subr.mxu0 0.0
      %1472 = vmatpush1.msra.mxu0 0.0
      %1473 = vmatprep.subr.mxu0 0.0
      %1474 = vmatpush1.msra.mxu0 0.0
      %1475 = vmatprep.subr.mxu0 0.0
      %1476 = vmatpush1.msra.mxu0 0.0
      %1477 = vmatprep.subr.mxu0 0.0
      %1478 = vmatpush1.msra.mxu0 0.0
      %1479 = vmatprep.subr.mxu0 0.0
      %1480 = vmatpush1.msra.mxu0 0.0
      %1481 = vmatprep.subr.mxu0 0.0
      %1482 = vmatpush1.msra.mxu0 0.0
      %1483 = vmatprep.subr.mxu0 0.0
      %1484 = vmatpush1.msra.mxu0 0.0
      %1485 = vmatprep.subr.mxu0 0.0
      %1486 = vmatpush1.msra.mxu0 0.0
      %1487 = vmatprep.mubr.f32.mxu0 0.0
      %1488 = vmatmul.mubr.f32.gmra.mrb[0].mxu0 %v1344
      %v1489 = vpop.f32.mrb[0].mxu0
      %v1490 = vadd.f32 0.0, %v1489
      %v1491 = vpop.f32.mrb[0].mxu0
      %1492 = vdwg.mxu0
      %v1493 = vadd.f32 %v1326, %v1419
      %v1494 = vadd.f32 %v1327, %v1421
      %v1495 = vadd.f32 %v1328, %v1490
      %s1496 = scalar_lea.vmem %s0, 64
      %v1497 = vld [vmem:[%s1496] sm:$0xff]
      %1498 = vrot.lane.b32.xlu0 %v171, 90
      %v1499 = vpop.permute.xlu0 %1498
      %1500 = vrot.lane.b32.xlu0 %v178, 90
      %v1501 = vpop.permute.xlu0 %1500
      %1502 = vrot.lane.b32.xlu0 %v172, 90
      %v1503 = vpop.permute.xlu0 %1502
      %1504 = vrot.lane.b32.xlu0 %v179, 90
      %v1505 = vpop.permute.xlu0 %1504
      %vm1506 = vcmask 736256
      %v1507 = vsel %vm1506, %v1499, %v1501
      %v1508 = vsel %vm1506, %v1501, %v1503
      %v1509 = vsel %vm1506, %v1503, %v1505
      %v1511 = vsel %vm192, %v1497, 0
      %v1513 = vsel %vm196, %v1507, 0
      %v1515 = vsel %vm196, %v1508, 0
      %v1517 = vsel %vm196, %v1509, 0
      %1519 = vmatprep.subr.mxu0 %v1515
      %1520 = vmatpush1.msra.mxu0 %v1513
      %1521 = vmatprep.subr.mxu0 0.0
      %1522 = vmatpush1.msra.mxu0 0.0
      %1523 = vmatprep.subr.mxu0 0.0
      %1524 = vmatpush1.msra.mxu0 0.0
      %1525 = vmatprep.subr.mxu0 0.0
      %1526 = vmatpush1.msra.mxu0 0.0
      %1527 = vmatprep.subr.mxu0 0.0
      %1528 = vmatpush1.msra.mxu0 0.0
      %1529 = vmatprep.subr.mxu0 0.0
      %1530 = vmatpush1.msra.mxu0 0.0
      %1531 = vmatprep.subr.mxu0 0.0
      %1532 = vmatpush1.msra.mxu0 0.0
      %1533 = vmatprep.subr.mxu0 0.0
      %1534 = vmatpush1.msra.mxu0 0.0
      %1535 = vmatprep.subr.mxu0 0.0
      %1536 = vmatpush1.msra.mxu0 0.0
      %1537 = vmatprep.subr.mxu0 0.0
      %1538 = vmatpush1.msra.mxu0 0.0
      %1539 = vmatprep.subr.mxu0 0.0
      %1540 = vmatpush1.msra.mxu0 0.0
      %1541 = vmatprep.subr.mxu0 0.0
      %1542 = vmatpush1.msra.mxu0 0.0
      %1543 = vmatprep.subr.mxu0 0.0
      %1544 = vmatpush1.msra.mxu0 0.0
      %1545 = vmatprep.subr.mxu0 0.0
      %1546 = vmatpush1.msra.mxu0 0.0
      %1547 = vmatprep.subr.mxu0 0.0
      %1548 = vmatpush1.msra.mxu0 0.0
      %1549 = vmatprep.subr.mxu0 0.0
      %1550 = vmatpush1.msra.mxu0 0.0
      %1551 = vmatprep.subr.mxu0 0.0
      %1552 = vmatpush1.msra.mxu0 0.0
      %1553 = vmatprep.subr.mxu0 0.0
      %1554 = vmatpush1.msra.mxu0 0.0
      %1555 = vmatprep.subr.mxu0 0.0
      %1556 = vmatpush1.msra.mxu0 0.0
      %1557 = vmatprep.subr.mxu0 0.0
      %1558 = vmatpush1.msra.mxu0 0.0
      %1559 = vmatprep.subr.mxu0 0.0
      %1560 = vmatpush1.msra.mxu0 0.0
      %1561 = vmatprep.subr.mxu0 0.0
      %1562 = vmatpush1.msra.mxu0 0.0
      %1563 = vmatprep.subr.mxu0 0.0
      %1564 = vmatpush1.msra.mxu0 0.0
      %1565 = vmatprep.subr.mxu0 0.0
      %1566 = vmatpush1.msra.mxu0 0.0
      %1567 = vmatprep.subr.mxu0 0.0
      %1568 = vmatpush1.msra.mxu0 0.0
      %1569 = vmatprep.subr.mxu0 0.0
      %1570 = vmatpush1.msra.mxu0 0.0
      %1571 = vmatprep.subr.mxu0 0.0
      %1572 = vmatpush1.msra.mxu0 0.0
      %1573 = vmatprep.subr.mxu0 0.0
      %1574 = vmatpush1.msra.mxu0 0.0
      %1575 = vmatprep.subr.mxu0 0.0
      %1576 = vmatpush1.msra.mxu0 0.0
      %1577 = vmatprep.subr.mxu0 0.0
      %1578 = vmatpush1.msra.mxu0 0.0
      %1579 = vmatprep.subr.mxu0 0.0
      %1580 = vmatpush1.msra.mxu0 0.0
      %1581 = vmatprep.subr.mxu0 0.0
      %1582 = vmatpush1.msra.mxu0 0.0
      %1583 = vmatprep.mubr.f32.mxu0 0.0
      %1584 = vmatmul.mubr.f32.gmra.mrb[0].mxu0 %v1511
      %v1585 = vpop.f32.mrb[0].mxu0
      %v1586 = vadd.f32 0.0, %v1585
      %v1587 = vpop.f32.mrb[0].mxu0
      %v1588 = vadd.f32 0.0, %v1587
      %1589 = vdwg.mxu0
      %1590 = vmatprep.subr.mxu0 0.0
      %1591 = vmatpush1.msra.mxu0 %v1517
      %1592 = vmatprep.subr.mxu0 0.0
      %1593 = vmatpush1.msra.mxu0 0.0
      %1594 = vmatprep.subr.mxu0 0.0
      %1595 = vmatpush1.msra.mxu0 0.0
      %1596 = vmatprep.subr.mxu0 0.0
      %1597 = vmatpush1.msra.mxu0 0.0
      %1598 = vmatprep.subr.mxu0 0.0
      %1599 = vmatpush1.msra.mxu0 0.0
      %1600 = vmatprep.subr.mxu0 0.0
      %1601 = vmatpush1.msra.mxu0 0.0
      %1602 = vmatprep.subr.mxu0 0.0
      %1603 = vmatpush1.msra.mxu0 0.0
      %1604 = vmatprep.subr.mxu0 0.0
      %1605 = vmatpush1.msra.mxu0 0.0
      %1606 = vmatprep.subr.mxu0 0.0
      %1607 = vmatpush1.msra.mxu0 0.0
      %1608 = vmatprep.subr.mxu0 0.0
      %1609 = vmatpush1.msra.mxu0 0.0
      %1610 = vmatprep.subr.mxu0 0.0
      %1611 = vmatpush1.msra.mxu0 0.0
      %1612 = vmatprep.subr.mxu0 0.0
      %1613 = vmatpush1.msra.mxu0 0.0
      %1614 = vmatprep.subr.mxu0 0.0
      %1615 = vmatpush1.msra.mxu0 0.0
      %1616 = vmatprep.subr.mxu0 0.0
      %1617 = vmatpush1.msra.mxu0 0.0
      %1618 = vmatprep.subr.mxu0 0.0
      %1619 = vmatpush1.msra.mxu0 0.0
      %1620 = vmatprep.subr.mxu0 0.0
      %1621 = vmatpush1.msra.mxu0 0.0
      %1622 = vmatprep.subr.mxu0 0.0
      %1623 = vmatpush1.msra.mxu0 0.0
      %1624 = vmatprep.subr.mxu0 0.0
      %1625 = vmatpush1.msra.mxu0 0.0
      %1626 = vmatprep.subr.mxu0 0.0
      %1627 = vmatpush1.msra.mxu0 0.0
      %1628 = vmatprep.subr.mxu0 0.0
      %1629 = vmatpush1.msra.mxu0 0.0
      %1630 = vmatprep.subr.mxu0 0.0
      %1631 = vmatpush1.msra.mxu0 0.0
      %1632 = vmatprep.subr.mxu0 0.0
      %1633 = vmatpush1.msra.mxu0 0.0
      %1634 = vmatprep.subr.mxu0 0.0
      %1635 = vmatpush1.msra.mxu0 0.0
      %1636 = vmatprep.subr.mxu0 0.0
      %1637 = vmatpush1.msra.mxu0 0.0
      %1638 = vmatprep.subr.mxu0 0.0
      %1639 = vmatpush1.msra.mxu0 0.0
      %1640 = vmatprep.subr.mxu0 0.0
      %1641 = vmatpush1.msra.mxu0 0.0
      %1642 = vmatprep.subr.mxu0 0.0
      %1643 = vmatpush1.msra.mxu0 0.0
      %1644 = vmatprep.subr.mxu0 0.0
      %1645 = vmatpush1.msra.mxu0 0.0
      %1646 = vmatprep.subr.mxu0 0.0
      %1647 = vmatpush1.msra.mxu0 0.0
      %1648 = vmatprep.subr.mxu0 0.0
      %1649 = vmatpush1.msra.mxu0 0.0
      %1650 = vmatprep.subr.mxu0 0.0
      %1651 = vmatpush1.msra.mxu0 0.0
      %1652 = vmatprep.subr.mxu0 0.0
      %1653 = vmatpush1.msra.mxu0 0.0
      %1654 = vmatprep.mubr.f32.mxu0 0.0
      %1655 = vmatmul.mubr.f32.gmra.mrb[0].mxu0 %v1511
      %v1656 = vpop.f32.mrb[0].mxu0
      %v1657 = vadd.f32 0.0, %v1656
      %v1658 = vpop.f32.mrb[0].mxu0
      %1659 = vdwg.mxu0
      %v1660 = vadd.f32 %v1493, %v1586
      %v1661 = vadd.f32 %v1494, %v1588
      %v1662 = vadd.f32 %v1495, %v1657
      %v1663 = vld [vmem:[%s1] sm:$0xff]
      %1665 = vset.pattern.permute.xlu0 0
      %1666 = vperm.xlu0 %1665, %v1663
      %v1667 = vpop.permute.xlu0 %1666
      %v1669 = vadd.f32 %v1660, %v1667
      %v1670 = vadd.f32 %v1661, %v1667
      %v1671 = vadd.f32 %v1662, %v1667
      %v1672 = vmax.f32 %v1669, 0.0
      %v1673 = vmax.f32 %v1670, 0.0
      %v1674 = vmax.f32 %v1671, 0.0
      %1675 = vst [vmem:[%s170] sm:$0xff] %v1672
      %1676 = vst [vmem:[%s170 + $0x8] sm:$0xff] %v1673
      %1677 = vst [vmem:[%s170 + $0x10] sm:$0xff] %v1674
      %p1678 = scmp.lt.s32.totalorder %s14, 1
      %s1679 = scalar_select %p1678, %s14, 1
      %s1680 = smul.addr %s1679, 3
      %s1681 = smul.addr %s1680, 8
      %s1682 = scalar_lea.vmem %s3, %s1681
      // Predicated region
      $region33: #{conv_cell_forward.1} parent=31 // pred_check
        %p1683 = pneg %p100
      $region34: #{conv_cell_forward.1} parent=31 // pred_check_branch
        %1685 = sbr.rel (%p1683) target = $region36
      $region35: #{conv_cell_forward.1} parent=31 // pred_region
        _
      $region36: #{conv_cell_forward.1} parent=31 // pred_fallthru
        _
    $region32: #{conv_cell_forward.1} parent=5 // pred_fallthru
      _
    %p1686 = scmp.le.s32.totalorder 2, %s9
    // Predicated region
    $region37: #{conv_cell_forward.1} parent=5 // pred_check
      %p1687 = pneg %p1686
    $region38: #{conv_cell_forward.1} parent=5 // pred_check_branch
      %1689 = sbr.rel (%p1687) target = $region40
    $region39: #{conv_cell_forward.1} parent=5 // pred_region
      %s1690 = ssub.s32 %s9, 2
      // Predicated region
      $region41: #{conv_cell_forward.1} parent=39 // pred_check
        %p1691 = pneg %p106
      $region42: #{conv_cell_forward.1} parent=39 // pred_check_branch
        %1693 = sbr.rel (%p1691) target = $region44
      $region43: #{conv_cell_forward.1} parent=39 // pred_region
        %p1694 = scmp.lt.s32.totalorder %s15, 1
        %s1695 = scalar_select %p1694, %s15, 1
        %s1696 = smul.addr %s1695, 3
        %s1697 = smul.addr %s1696, 8
        %s1698 = scalar_lea.vmem %s3, %s1697
      $region44: #{conv_cell_forward.1} parent=39 // pred_fallthru
        _
    $region40: #{conv_cell_forward.1} parent=5 // pred_fallthru
      _
  $region6: #{conv_cell_forward.1} parent=0 // loop_footer
    %s13 = sadd.s32 1, %s9
  $region7: #{conv_cell_forward.1} parent=0 // loop_footer_branch
    %8 = sbr.rel target = $region3
  $region8: #{conv_cell_forward.1} parent=0 // loop_exit
    _

</llo_original>
